<compile_context>
chip_gen: v7x
topology: tpu7x:2x2x1
jax: 0.10.0
libtpu: 0.0.40
codegen_flags: <defaults>
</compile_context>

<pallas_src>
import functools

import jax
import jax.numpy as jnp
from jax.experimental import pallas as pl
from jax.experimental.pallas import tpu as pltpu


def _dehaze_kernel(xvpad_ref,
                   wb1_ref, b1t_ref, wb2_ref, b2t_ref,
                   sumw_ref, wc1_ref, bc1_ref, wc2_ref, bc2_ref, tilec_ref,
                   wp1bd_ref, bp1t_ref, wp2bd_ref, bp2t_ref, expc_ref,
                   out_ref, rpad_ref, *, K, H, W, C):
    P = K // 2
    WC = W * C
    inv_hw = jnp.float32(1.0 / (H * W))

    # Skip-path rows are the center band of the vertically padded input
    # (no separate un-padded input stream needed).
    x_cen = xvpad_ref[0, P:P + H, :]                                 # (H, WC) f32

    # ---- conv1: K banded matmuls (bf16 operands, f32 accumulate) + ReLU + skip
    acc1 = jnp.zeros((H, WC), jnp.float32)
    for kh in range(K):
        slab = xvpad_ref[0, kh:kh + H, :].astype(jnp.bfloat16)       # (H, WC)
        acc1 = acc1 + jnp.dot(slab, wb1_ref[kh],
                              preferred_element_type=jnp.float32)
    res = jnp.maximum(acc1 + b1t_ref[...], 0.0) + x_cen              # (H, WC)

    # ---- stage `res` for conv2; zero ONLY the P-row vertical halo
    rpad_ref[0:P, :] = jnp.zeros((P, WC), jnp.float32)
    rpad_ref[P + H:P + H + P, :] = jnp.zeros((P, WC), jnp.float32)
    rpad_ref[P:P + H, :] = res

    # ---- conv2
    acc2 = jnp.zeros((H, WC), jnp.float32)
    for kh in range(K):
        slab = rpad_ref[kh:kh + H, :].astype(jnp.bfloat16)
        acc2 = acc2 + jnp.dot(slab, wb2_ref[kh],
                              preferred_element_type=jnp.float32)
    res2 = acc2 + b2t_ref[...]                                       # (H, WC)

    # ---- CALayer: global avg pool -> 1x1 -> ReLU -> 1x1 -> sigmoid -> scale
    col_sum = jnp.sum(res2, axis=0, keepdims=True)                   # (1, WC)
    y = jnp.dot(col_sum, sumw_ref[...],
                preferred_element_type=jnp.float32) * inv_hw          # (1, C)
    y = jnp.maximum(jnp.dot(y, wc1_ref[...],
                            preferred_element_type=jnp.float32) + bc1_ref[...], 0.0)
    y = jax.nn.sigmoid(jnp.dot(y, wc2_ref[...],
                               preferred_element_type=jnp.float32) + bc2_ref[...])
    y_row = jnp.dot(y, tilec_ref[...],
                    preferred_element_type=jnp.float32)               # (1, WC)
    res3 = res2 * y_row

    # ---- PALayer: per-pixel 1x1 -> ReLU -> 1x1 -> sigmoid -> per-pixel scale
    p1 = jnp.maximum(
        jnp.dot(res3.astype(jnp.bfloat16), wp1bd_ref[...],
                preferred_element_type=jnp.float32) + bp1t_ref[...], 0.0)   # (H, W*c8)
    s = jnp.dot(p1, wp2bd_ref[...],
                preferred_element_type=jnp.float32) + bp2t_ref[...]          # (H, W)
    p_full = jnp.dot(jax.nn.sigmoid(s), expc_ref[...],
                     preferred_element_type=jnp.float32)                     # (H, WC)

    # ---- lane-dense (H, W*C) output store + final skip
    out_ref[0] = (res3 * p_full + x_cen).astype(out_ref.dtype)


def _band_conv_weights(w_hwio, width):
    """(K,K,Cin,Cout) HWIO -> (K, width*Cin, width*Cout) banded matrices.

    B[kh] implements, for one vertical tap kh, the SAME 1-D conv along W folded
    into the lane dimension (lane index = w*C + c)."""
    K = w_hwio.shape[0]
    P = K // 2
    cin, cout = w_hwio.shape[2], w_hwio.shape[3]
    shifts = jnp.stack([jnp.eye(width, width, P - kw, dtype=w_hwio.dtype)
                        for kw in range(K)])                  # (Kw, Win, Wout)
    b = jnp.einsum("kvw,hkio->hviwo", shifts, w_hwio)         # (Kh, Win, Cin, Wout, Cout)
    return b.reshape(K, width * cin, width * cout)


@functools.partial(jax.jit, static_argnames="kernel_size")
def dehaze_block(x_nchw, params, *, kernel_size=3):
    """x_nchw: (N, C, H, W) float32. Returns (N, C, H, W)."""
    (w1, b1, w2, b2, wc1, bc1, wc2, bc2, wp1, bp1, wp2, bp2) = params
    N, C, H, W = x_nchw.shape
    K = kernel_size
    P = K // 2
    Hp = H + 2 * P
    WC = W * C

    # --- activations in lane-dense (N, H, W*C); zero-pad vertically only ---
    x_nhwc = jnp.transpose(x_nchw, (0, 2, 3, 1)).astype(jnp.float32)
    x_vpad = jnp.pad(x_nhwc.reshape(N, H, WC), ((0, 0), (P, P), (0, 0)))

    # --- weights rewritten for the lane-packed layout (one-time, host side) ---
    eye_w = jnp.eye(W, dtype=jnp.float32)
    eye_c = jnp.eye(C, dtype=jnp.float32)
    wb1 = _band_conv_weights(w1.astype(jnp.float32), W).astype(jnp.bfloat16)   # (K, WC, WC)
    wb2 = _band_conv_weights(w2.astype(jnp.float32), W).astype(jnp.bfloat16)
    b1t = jnp.tile(b1.astype(jnp.float32), (1, W))            # (1, WC)
    b2t = jnp.tile(b2.astype(jnp.float32), (1, W))            # (1, WC)
    sumw = jnp.tile(eye_c, (W, 1))                            # (WC, C): sum over w
    tilec = jnp.tile(eye_c, (1, W))                           # (C, WC): tile back over w
    wp1bd = jnp.kron(eye_w, wp1.astype(jnp.float32)).astype(jnp.bfloat16)      # (WC, W*c8)
    bp1t = jnp.tile(bp1.astype(jnp.float32), (1, W))          # (1, W*c8)
    wp2bd = jnp.kron(eye_w, wp2.astype(jnp.float32))          # (W*c8, W)
    bp2t = jnp.tile(bp2.astype(jnp.float32), (1, W))          # (1, W)
    expc = jnp.kron(eye_w, jnp.ones((1, C), jnp.float32))     # (W, WC): per-pixel -> per-channel
    wc1f, bc1f = wc1.astype(jnp.float32), bc1.astype(jnp.float32)
    wc2f, bc2f = wc2.astype(jnp.float32), bc2.astype(jnp.float32)

    weights = (wb1, b1t, wb2, b2t, sumw, wc1f, bc1f, wc2f, bc2f, tilec,
               wp1bd, bp1t, wp2bd, bp2t, expc)

    def rep(arr):
        zeros = (0,) * arr.ndim
        return pl.BlockSpec(arr.shape, lambda n, _z=zeros: _z)

    kernel = functools.partial(_dehaze_kernel, K=K, H=H, W=W, C=C)
    out = pl.pallas_call(
        kernel,
        out_shape=jax.ShapeDtypeStruct((N, H, WC), jnp.float32),
        grid_spec=pltpu.PrefetchScalarGridSpec(
            num_scalar_prefetch=0,
            grid=(N,),
            in_specs=[
                pl.BlockSpec((1, Hp, WC), lambda n: (n, 0, 0)),   # vert-padded input
            ] + [rep(a) for a in weights],
            out_specs=pl.BlockSpec((1, H, WC), lambda n: (n, 0, 0)),
            scratch_shapes=[pltpu.VMEM((Hp, WC), jnp.float32)],
        ),
        compiler_params=pltpu.CompilerParams(
            dimension_semantics=("parallel",)),   # images independent -> both v7x TCs
    )(x_vpad, *weights)

    return jnp.transpose(out.reshape(N, H, W, C), (0, 3, 1, 2))


def dehaze_block_reference(x_nchw, params):
    """Pure-JAX reference (NHWC internally), matching the PyTorch forward."""
    (w1, b1, w2, b2, wc1, bc1, wc2, bc2, wp1, bp1, wp2, bp2) = params
    x = jnp.transpose(x_nchw, (0, 2, 3, 1))
    dn = ("NHWC", "HWIO", "NHWC")
    conv = lambda a, w: jax.lax.conv_general_dilated(
        a, w, (1, 1), "SAME", dimension_numbers=dn,
        precision=jax.lax.Precision.HIGHEST)
    r = jax.nn.relu(conv(x, w1) + b1) + x
    r = conv(r, w2) + b2
    y = jnp.mean(r, axis=(1, 2), keepdims=True)
    y = jax.nn.relu(jnp.einsum("nijc,cd->nijd", y, wc1) + bc1)
    y = jax.nn.sigmoid(jnp.einsum("nijc,cd->nijd", y, wc2) + bc2)
    r = r * y
    p = jax.nn.relu(jnp.einsum("nhwc,cd->nhwd", r, wp1) + bp1)
    p = jax.nn.sigmoid(jnp.einsum("nhwc,cd->nhwd", p, wp2) + bp2)
    r = r * p + x
    return jnp.transpose(r, (0, 3, 1, 2))


def make_params(key, dim, kernel_size):
    """Deterministic synthetic parameters (shapes from DehazeBlock.__init__)."""
    c8 = dim // 8
    ks = jax.random.split(key, 12)
    s = 0.1
    w1 = jax.random.normal(ks[0], (kernel_size, kernel_size, dim, dim), jnp.float32) * s
    b1 = jax.random.normal(ks[1], (1, dim), jnp.float32) * s
    w2 = jax.random.normal(ks[2], (kernel_size, kernel_size, dim, dim), jnp.float32) * s
    b2 = jax.random.normal(ks[3], (1, dim), jnp.float32) * s
    wc1 = jax.random.normal(ks[4], (dim, c8), jnp.float32) * s
    bc1 = jax.random.normal(ks[5], (1, c8), jnp.float32) * s
    wc2 = jax.random.normal(ks[6], (c8, dim), jnp.float32) * s
    bc2 = jax.random.normal(ks[7], (1, dim), jnp.float32) * s
    wp1 = jax.random.normal(ks[8], (dim, c8), jnp.float32) * s
    bp1 = jax.random.normal(ks[9], (1, c8), jnp.float32) * s
    wp2 = jax.random.normal(ks[10], (c8, 1), jnp.float32) * s
    bp2 = jax.random.normal(ks[11], (1, 1), jnp.float32) * s
    return (w1, b1, w2, b2, wc1, bc1, wc2, bc2, wp1, bp1, wp2, bp2)


if __name__ == "__main__":
    N, C, H, W = 2, 16, 16, 16   # dim=16 so dim//8=2; kernel_size=3
    K = 3

    key = jax.random.PRNGKey(0)
    kx, kp = jax.random.split(key)
    x = jax.random.normal(kx, (N, C, H, W), jnp.float32)
    params = make_params(kp, C, K)

    out = dehaze_block(x, params, kernel_size=K)
    out = jax.block_until_ready(out)

    ref = jax.block_until_ready(dehaze_block_reference(x, params))
    assert out.shape == (N, C, H, W)
    # bf16 matmul operands (f32 accumulate) vs. HIGHEST-precision f32 reference
    # -> relaxed tolerance.
    err = float(jnp.max(jnp.abs(out - ref)))
    assert jnp.allclose(out, ref, rtol=5e-2, atol=5e-2), f"max abs err {err}"

    print("KERNEL_OK")
</pallas_src>

<mosaic_0001>
module attributes {stable_mosaic.version = 11 : i64} {
  func.func @_dehaze_kernel(%arg0: i32, %arg1: memref<1x18x256xf32, #tpu.memory_space<vmem>>, %arg2: memref<3x256x256xbf16, #tpu.memory_space<vmem>>, %arg3: memref<1x256xf32, #tpu.memory_space<vmem>>, %arg4: memref<3x256x256xbf16, #tpu.memory_space<vmem>>, %arg5: memref<1x256xf32, #tpu.memory_space<vmem>>, %arg6: memref<256x16xf32, #tpu.memory_space<vmem>>, %arg7: memref<16x2xf32, #tpu.memory_space<vmem>>, %arg8: memref<1x2xf32, #tpu.memory_space<vmem>>, %arg9: memref<2x16xf32, #tpu.memory_space<vmem>>, %arg10: memref<1x16xf32, #tpu.memory_space<vmem>>, %arg11: memref<16x256xf32, #tpu.memory_space<vmem>>, %arg12: memref<256x32xbf16, #tpu.memory_space<vmem>>, %arg13: memref<1x32xf32, #tpu.memory_space<vmem>>, %arg14: memref<32x16xf32, #tpu.memory_space<vmem>>, %arg15: memref<1x16xf32, #tpu.memory_space<vmem>>, %arg16: memref<16x256xf32, #tpu.memory_space<vmem>>, %arg17: memref<1x16x256xf32, #tpu.memory_space<vmem>>, %arg18: memref<18x256xf32, #tpu.memory_space<vmem>>) attributes {dimension_semantics = [#tpu.dimension_semantics<parallel>], iteration_bounds = array<i64: 2>, scalar_prefetch = 0 : i64, scratch_operands = 1 : i64, tpu.core_type = #tpu.core_type<tc>, window_params = [{transform_indices = @transform_0, window_bounds = array<i64: 1, 18, 256>}, {pipeline_mode = #tpu.pipeline_mode<synchronous>, transform_indices = @transform_1, window_bounds = array<i64: 3, 256, 256>}, {pipeline_mode = #tpu.pipeline_mode<synchronous>, transform_indices = @transform_2, window_bounds = array<i64: 1, 256>}, {pipeline_mode = #tpu.pipeline_mode<synchronous>, transform_indices = @transform_3, window_bounds = array<i64: 3, 256, 256>}, {pipeline_mode = #tpu.pipeline_mode<synchronous>, transform_indices = @transform_4, window_bounds = array<i64: 1, 256>}, {pipeline_mode = #tpu.pipeline_mode<synchronous>, transform_indices = @transform_5, window_bounds = array<i64: 256, 16>}, {pipeline_mode = #tpu.pipeline_mode<synchronous>, transform_indices = @transform_6, window_bounds = array<i64: 16, 2>}, {pipeline_mode = #tpu.pipeline_mode<synchronous>, transform_indices = @transform_7, window_bounds = array<i64: 1, 2>}, {pipeline_mode = #tpu.pipeline_mode<synchronous>, transform_indices = @transform_8, window_bounds = array<i64: 2, 16>}, {pipeline_mode = #tpu.pipeline_mode<synchronous>, transform_indices = @transform_9, window_bounds = array<i64: 1, 16>}, {pipeline_mode = #tpu.pipeline_mode<synchronous>, transform_indices = @transform_10, window_bounds = array<i64: 16, 256>}, {pipeline_mode = #tpu.pipeline_mode<synchronous>, transform_indices = @transform_11, window_bounds = array<i64: 256, 32>}, {pipeline_mode = #tpu.pipeline_mode<synchronous>, transform_indices = @transform_12, window_bounds = array<i64: 1, 32>}, {pipeline_mode = #tpu.pipeline_mode<synchronous>, transform_indices = @transform_13, window_bounds = array<i64: 32, 16>}, {pipeline_mode = #tpu.pipeline_mode<synchronous>, transform_indices = @transform_14, window_bounds = array<i64: 1, 16>}, {pipeline_mode = #tpu.pipeline_mode<synchronous>, transform_indices = @transform_15, window_bounds = array<i64: 16, 256>}, {transform_indices = @transform_16, window_bounds = array<i64: 1, 16, 256>}]} {
    %c0 = arith.constant 0 : index
    %c1 = arith.constant 1 : index
    %c0_0 = arith.constant 0 : index
    %0 = vector.load %arg1[%c0, %c1, %c0_0] : memref<1x18x256xf32, #tpu.memory_space<vmem>>, vector<1x16x256xf32>
    %1 = vector.shape_cast %0 : vector<1x16x256xf32> to vector<16x256xf32>
    %cst = arith.constant 0.000000e+00 : f32
    %2 = vector.broadcast %cst : f32 to vector<16x256xf32>
    %c0_1 = arith.constant 0 : index
    %c0_2 = arith.constant 0 : index
    %c0_3 = arith.constant 0 : index
    %3 = vector.load %arg1[%c0_1, %c0_2, %c0_3] : memref<1x18x256xf32, #tpu.memory_space<vmem>>, vector<1x16x256xf32>
    %4 = vector.shape_cast %3 : vector<1x16x256xf32> to vector<16x256xf32>
    %5 = arith.truncf %4 : vector<16x256xf32> to vector<16x256xbf16>
    %c0_4 = arith.constant 0 : index
    %c0_5 = arith.constant 0 : index
    %c0_6 = arith.constant 0 : index
    %6 = vector.load %arg2[%c0_4, %c0_5, %c0_6] : memref<3x256x256xbf16, #tpu.memory_space<vmem>>, vector<1x256x256xbf16>
    %7 = vector.shape_cast %6 : vector<1x256x256xbf16> to vector<256x256xbf16>
    %cst_7 = arith.constant dense<0.000000e+00> : vector<16x256xf32>
    %8 = tpu.matmul %5, %7, %cst_7 {dimension_numbers = #tpu.dot_dimension_numbers<[1], [0], [0], [1], [0, 0, 1, 1], [], []>} : vector<16x256xbf16>, vector<256x256xbf16>, vector<16x256xf32> -> vector<16x256xf32>
    %9 = arith.addf %2, %8 : vector<16x256xf32>
    %c0_8 = arith.constant 0 : index
    %c1_9 = arith.constant 1 : index
    %c0_10 = arith.constant 0 : index
    %10 = vector.load %arg1[%c0_8, %c1_9, %c0_10] : memref<1x18x256xf32, #tpu.memory_space<vmem>>, vector<1x16x256xf32>
    %11 = vector.shape_cast %10 : vector<1x16x256xf32> to vector<16x256xf32>
    %12 = arith.truncf %11 : vector<16x256xf32> to vector<16x256xbf16>
    %c1_11 = arith.constant 1 : index
    %c0_12 = arith.constant 0 : index
    %c0_13 = arith.constant 0 : index
    %13 = vector.load %arg2[%c1_11, %c0_12, %c0_13] : memref<3x256x256xbf16, #tpu.memory_space<vmem>>, vector<1x256x256xbf16>
    %14 = vector.shape_cast %13 : vector<1x256x256xbf16> to vector<256x256xbf16>
    %cst_14 = arith.constant dense<0.000000e+00> : vector<16x256xf32>
    %15 = tpu.matmul %12, %14, %cst_14 {dimension_numbers = #tpu.dot_dimension_numbers<[1], [0], [0], [1], [0, 0, 1, 1], [], []>} : vector<16x256xbf16>, vector<256x256xbf16>, vector<16x256xf32> -> vector<16x256xf32>
    %16 = arith.addf %9, %15 : vector<16x256xf32>
    %c0_15 = arith.constant 0 : index
    %c2 = arith.constant 2 : index
    %c0_16 = arith.constant 0 : index
    %17 = vector.load %arg1[%c0_15, %c2, %c0_16] : memref<1x18x256xf32, #tpu.memory_space<vmem>>, vector<1x16x256xf32>
    %18 = vector.shape_cast %17 : vector<1x16x256xf32> to vector<16x256xf32>
    %19 = arith.truncf %18 : vector<16x256xf32> to vector<16x256xbf16>
    %c2_17 = arith.constant 2 : index
    %c0_18 = arith.constant 0 : index
    %c0_19 = arith.constant 0 : index
    %20 = vector.load %arg2[%c2_17, %c0_18, %c0_19] : memref<3x256x256xbf16, #tpu.memory_space<vmem>>, vector<1x256x256xbf16>
    %21 = vector.shape_cast %20 : vector<1x256x256xbf16> to vector<256x256xbf16>
    %cst_20 = arith.constant dense<0.000000e+00> : vector<16x256xf32>
    %22 = tpu.matmul %19, %21, %cst_20 {dimension_numbers = #tpu.dot_dimension_numbers<[1], [0], [0], [1], [0, 0, 1, 1], [], []>} : vector<16x256xbf16>, vector<256x256xbf16>, vector<16x256xf32> -> vector<16x256xf32>
    %23 = arith.addf %16, %22 : vector<16x256xf32>
    %c0_21 = arith.constant 0 : index
    %c0_22 = arith.constant 0 : index
    %24 = vector.load %arg3[%c0_21, %c0_22] : memref<1x256xf32, #tpu.memory_space<vmem>>, vector<1x256xf32>
    %25 = vector.broadcast %24 : vector<1x256xf32> to vector<16x256xf32>
    %26 = arith.addf %23, %25 : vector<16x256xf32>
    %cst_23 = arith.constant 0.000000e+00 : f32
    %27 = vector.broadcast %cst_23 : f32 to vector<16x256xf32>
    %28 = arith.maximumf %26, %27 : vector<16x256xf32>
    %29 = arith.addf %28, %1 : vector<16x256xf32>
    %cst_24 = arith.constant 0.000000e+00 : f32
    %30 = vector.broadcast %cst_24 : f32 to vector<1x256xf32>
    %c0_25 = arith.constant 0 : index
    %c0_26 = arith.constant 0 : index
    %31 = vector.load %arg18[%c0_25, %c0_26] : memref<18x256xf32, #tpu.memory_space<vmem>>, vector<1x256xf32>
    tpu.vector_store %arg18[%c0_25, %c0_26], %30 {strides = array<i32>} : memref<18x256xf32, #tpu.memory_space<vmem>>, vector<1x256xf32>,
    %cst_27 = arith.constant 0.000000e+00 : f32
    %32 = vector.broadcast %cst_27 : f32 to vector<1x256xf32>
    %c17 = arith.constant 17 : index
    %c0_28 = arith.constant 0 : index
    %33 = vector.load %arg18[%c17, %c0_28] : memref<18x256xf32, #tpu.memory_space<vmem>>, vector<1x256xf32>
    tpu.vector_store %arg18[%c17, %c0_28], %32 {strides = array<i32>} : memref<18x256xf32, #tpu.memory_space<vmem>>, vector<1x256xf32>,
    %c1_29 = arith.constant 1 : index
    %c0_30 = arith.constant 0 : index
    %34 = vector.load %arg18[%c1_29, %c0_30] : memref<18x256xf32, #tpu.memory_space<vmem>>, vector<16x256xf32>
    tpu.vector_store %arg18[%c1_29, %c0_30], %29 {strides = array<i32>} : memref<18x256xf32, #tpu.memory_space<vmem>>, vector<16x256xf32>,
    %cst_31 = arith.constant 0.000000e+00 : f32
    %35 = vector.broadcast %cst_31 : f32 to vector<16x256xf32>
    %c0_32 = arith.constant 0 : index
    %c0_33 = arith.constant 0 : index
    %36 = vector.load %arg18[%c0_32, %c0_33] : memref<18x256xf32, #tpu.memory_space<vmem>>, vector<16x256xf32>
    %37 = arith.truncf %36 : vector<16x256xf32> to vector<16x256xbf16>
    %c0_34 = arith.constant 0 : index
    %c0_35 = arith.constant 0 : index
    %c0_36 = arith.constant 0 : index
    %38 = vector.load %arg4[%c0_34, %c0_35, %c0_36] : memref<3x256x256xbf16, #tpu.memory_space<vmem>>, vector<1x256x256xbf16>
    %39 = vector.shape_cast %38 : vector<1x256x256xbf16> to vector<256x256xbf16>
    %cst_37 = arith.constant dense<0.000000e+00> : vector<16x256xf32>
    %40 = tpu.matmul %37, %39, %cst_37 {dimension_numbers = #tpu.dot_dimension_numbers<[1], [0], [0], [1], [0, 0, 1, 1], [], []>} : vector<16x256xbf16>, vector<256x256xbf16>, vector<16x256xf32> -> vector<16x256xf32>
    %41 = arith.addf %35, %40 : vector<16x256xf32>
    %c1_38 = arith.constant 1 : index
    %c0_39 = arith.constant 0 : index
    %42 = vector.load %arg18[%c1_38, %c0_39] : memref<18x256xf32, #tpu.memory_space<vmem>>, vector<16x256xf32>
    %43 = arith.truncf %42 : vector<16x256xf32> to vector<16x256xbf16>
    %c1_40 = arith.constant 1 : index
    %c0_41 = arith.constant 0 : index
    %c0_42 = arith.constant 0 : index
    %44 = vector.load %arg4[%c1_40, %c0_41, %c0_42] : memref<3x256x256xbf16, #tpu.memory_space<vmem>>, vector<1x256x256xbf16>
    %45 = vector.shape_cast %44 : vector<1x256x256xbf16> to vector<256x256xbf16>
    %cst_43 = arith.constant dense<0.000000e+00> : vector<16x256xf32>
    %46 = tpu.matmul %43, %45, %cst_43 {dimension_numbers = #tpu.dot_dimension_numbers<[1], [0], [0], [1], [0, 0, 1, 1], [], []>} : vector<16x256xbf16>, vector<256x256xbf16>, vector<16x256xf32> -> vector<16x256xf32>
    %47 = arith.addf %41, %46 : vector<16x256xf32>
    %c2_44 = arith.constant 2 : index
    %c0_45 = arith.constant 0 : index
    %48 = vector.load %arg18[%c2_44, %c0_45] : memref<18x256xf32, #tpu.memory_space<vmem>>, vector<16x256xf32>
    %49 = arith.truncf %48 : vector<16x256xf32> to vector<16x256xbf16>
    %c2_46 = arith.constant 2 : index
    %c0_47 = arith.constant 0 : index
    %c0_48 = arith.constant 0 : index
    %50 = vector.load %arg4[%c2_46, %c0_47, %c0_48] : memref<3x256x256xbf16, #tpu.memory_space<vmem>>, vector<1x256x256xbf16>
    %51 = vector.shape_cast %50 : vector<1x256x256xbf16> to vector<256x256xbf16>
    %cst_49 = arith.constant dense<0.000000e+00> : vector<16x256xf32>
    %52 = tpu.matmul %49, %51, %cst_49 {dimension_numbers = #tpu.dot_dimension_numbers<[1], [0], [0], [1], [0, 0, 1, 1], [], []>} : vector<16x256xbf16>, vector<256x256xbf16>, vector<16x256xf32> -> vector<16x256xf32>
    %53 = arith.addf %47, %52 : vector<16x256xf32>
    %c0_50 = arith.constant 0 : index
    %c0_51 = arith.constant 0 : index
    %54 = vector.load %arg5[%c0_50, %c0_51] : memref<1x256xf32, #tpu.memory_space<vmem>>, vector<1x256xf32>
    %55 = vector.broadcast %54 : vector<1x256xf32> to vector<16x256xf32>
    %56 = arith.addf %53, %55 : vector<16x256xf32>
    %cst_52 = arith.constant dense<0.000000e+00> : vector<256xf32>
    %57 = vector.multi_reduction <add>, %56, %cst_52 [0] : vector<16x256xf32> to vector<256xf32>
    %58 = vector.shape_cast %57 : vector<256xf32> to vector<1x256xf32>
    %c0_53 = arith.constant 0 : index
    %c0_54 = arith.constant 0 : index
    %59 = vector.load %arg6[%c0_53, %c0_54] : memref<256x16xf32, #tpu.memory_space<vmem>>, vector<256x16xf32>
    %cst_55 = arith.constant dense<0.000000e+00> : vector<1x16xf32>
    %60 = tpu.matmul %58, %59, %cst_55 {dimension_numbers = #tpu.dot_dimension_numbers<[1], [0], [0], [1], [0, 0, 1, 1], [], []>} : vector<1x256xf32>, vector<256x16xf32>, vector<1x16xf32> -> vector<1x16xf32>
    %cst_56 = arith.constant 3.906250e-03 : f32
    %61 = vector.broadcast %cst_56 : f32 to vector<1x16xf32>
    %62 = arith.mulf %60, %61 : vector<1x16xf32>
    %c0_57 = arith.constant 0 : index
    %c0_58 = arith.constant 0 : index
    %63 = vector.load %arg7[%c0_57, %c0_58] : memref<16x2xf32, #tpu.memory_space<vmem>>, vector<16x2xf32>
    %cst_59 = arith.constant dense<0.000000e+00> : vector<1x2xf32>
    %64 = tpu.matmul %62, %63, %cst_59 {dimension_numbers = #tpu.dot_dimension_numbers<[1], [0], [0], [1], [0, 0, 1, 1], [], []>} : vector<1x16xf32>, vector<16x2xf32>, vector<1x2xf32> -> vector<1x2xf32>
    %c0_60 = arith.constant 0 : index
    %c0_61 = arith.constant 0 : index
    %65 = vector.load %arg8[%c0_60, %c0_61] : memref<1x2xf32, #tpu.memory_space<vmem>>, vector<1x2xf32>
    %66 = arith.addf %64, %65 : vector<1x2xf32>
    %cst_62 = arith.constant 0.000000e+00 : f32
    %67 = vector.broadcast %cst_62 : f32 to vector<1x2xf32>
    %68 = arith.maximumf %66, %67 : vector<1x2xf32>
    %c0_63 = arith.constant 0 : index
    %c0_64 = arith.constant 0 : index
    %69 = vector.load %arg9[%c0_63, %c0_64] : memref<2x16xf32, #tpu.memory_space<vmem>>, vector<2x16xf32>
    %cst_65 = arith.constant dense<0.000000e+00> : vector<1x16xf32>
    %70 = tpu.matmul %68, %69, %cst_65 {dimension_numbers = #tpu.dot_dimension_numbers<[1], [0], [0], [1], [0, 0, 1, 1], [], []>} : vector<1x2xf32>, vector<2x16xf32>, vector<1x16xf32> -> vector<1x16xf32>
    %c0_66 = arith.constant 0 : index
    %c0_67 = arith.constant 0 : index
    %71 = vector.load %arg10[%c0_66, %c0_67] : memref<1x16xf32, #tpu.memory_space<vmem>>, vector<1x16xf32>
    %72 = arith.addf %70, %71 : vector<1x16xf32>
    %73 = arith.negf %72 : vector<1x16xf32>
    %74 = math.exp %73 : vector<1x16xf32>
    %cst_68 = arith.constant 1.000000e+00 : f32
    %75 = vector.broadcast %cst_68 : f32 to vector<1x16xf32>
    %76 = arith.addf %75, %74 : vector<1x16xf32>
    %77 = arith.divf %75, %76 : vector<1x16xf32>
    %c0_69 = arith.constant 0 : index
    %c0_70 = arith.constant 0 : index
    %78 = vector.load %arg11[%c0_69, %c0_70] : memref<16x256xf32, #tpu.memory_space<vmem>>, vector<16x256xf32>
    %cst_71 = arith.constant dense<0.000000e+00> : vector<1x256xf32>
    %79 = tpu.matmul %77, %78, %cst_71 {dimension_numbers = #tpu.dot_dimension_numbers<[1], [0], [0], [1], [0, 0, 1, 1], [], []>} : vector<1x16xf32>, vector<16x256xf32>, vector<1x256xf32> -> vector<1x256xf32>
    %80 = vector.broadcast %79 : vector<1x256xf32> to vector<16x256xf32>
    %81 = arith.mulf %56, %80 : vector<16x256xf32>
    %82 = arith.truncf %81 : vector<16x256xf32> to vector<16x256xbf16>
    %c0_72 = arith.constant 0 : index
    %c0_73 = arith.constant 0 : index
    %83 = vector.load %arg12[%c0_72, %c0_73] : memref<256x32xbf16, #tpu.memory_space<vmem>>, vector<256x32xbf16>
    %cst_74 = arith.constant dense<0.000000e+00> : vector<16x32xf32>
    %84 = tpu.matmul %82, %83, %cst_74 {dimension_numbers = #tpu.dot_dimension_numbers<[1], [0], [0], [1], [0, 0, 1, 1], [], []>} : vector<16x256xbf16>, vector<256x32xbf16>, vector<16x32xf32> -> vector<16x32xf32>
    %c0_75 = arith.constant 0 : index
    %c0_76 = arith.constant 0 : index
    %85 = vector.load %arg13[%c0_75, %c0_76] : memref<1x32xf32, #tpu.memory_space<vmem>>, vector<1x32xf32>
    %86 = vector.broadcast %85 : vector<1x32xf32> to vector<16x32xf32>
    %87 = arith.addf %84, %86 : vector<16x32xf32>
    %cst_77 = arith.constant 0.000000e+00 : f32
    %88 = vector.broadcast %cst_77 : f32 to vector<16x32xf32>
    %89 = arith.maximumf %87, %88 : vector<16x32xf32>
    %c0_78 = arith.constant 0 : index
    %c0_79 = arith.constant 0 : index
    %90 = vector.load %arg14[%c0_78, %c0_79] : memref<32x16xf32, #tpu.memory_space<vmem>>, vector<32x16xf32>
    %cst_80 = arith.constant dense<0.000000e+00> : vector<16x16xf32>
    %91 = tpu.matmul %89, %90, %cst_80 {dimension_numbers = #tpu.dot_dimension_numbers<[1], [0], [0], [1], [0, 0, 1, 1], [], []>} : vector<16x32xf32>, vector<32x16xf32>, vector<16x16xf32> -> vector<16x16xf32>
    %c0_81 = arith.constant 0 : index
    %c0_82 = arith.constant 0 : index
    %92 = vector.load %arg15[%c0_81, %c0_82] : memref<1x16xf32, #tpu.memory_space<vmem>>, vector<1x16xf32>
    %93 = vector.broadcast %92 : vector<1x16xf32> to vector<16x16xf32>
    %94 = arith.addf %91, %93 : vector<16x16xf32>
    %95 = arith.negf %94 : vector<16x16xf32>
    %96 = math.exp %95 : vector<16x16xf32>
    %cst_83 = arith.constant 1.000000e+00 : f32
    %97 = vector.broadcast %cst_83 : f32 to vector<16x16xf32>
    %98 = arith.addf %97, %96 : vector<16x16xf32>
    %99 = arith.divf %97, %98 : vector<16x16xf32>
    %c0_84 = arith.constant 0 : index
    %c0_85 = arith.constant 0 : index
    %100 = vector.load %arg16[%c0_84, %c0_85] : memref<16x256xf32, #tpu.memory_space<vmem>>, vector<16x256xf32>
    %cst_86 = arith.constant dense<0.000000e+00> : vector<16x256xf32>
    %101 = tpu.matmul %99, %100, %cst_86 {dimension_numbers = #tpu.dot_dimension_numbers<[1], [0], [0], [1], [0, 0, 1, 1], [], []>} : vector<16x16xf32>, vector<16x256xf32>, vector<16x256xf32> -> vector<16x256xf32>
    %102 = arith.mulf %81, %101 : vector<16x256xf32>
    %103 = arith.addf %102, %1 : vector<16x256xf32>
    %c0_87 = arith.constant 0 : index
    %c0_88 = arith.constant 0 : index
    %c0_89 = arith.constant 0 : index
    %104 = vector.load %arg17[%c0_87, %c0_88, %c0_89] : memref<1x16x256xf32, #tpu.memory_space<vmem>>, vector<1x16x256xf32>
    %105 = vector.shape_cast %104 : vector<1x16x256xf32> to vector<16x256xf32>
    %106 = vector.shape_cast %103 : vector<16x256xf32> to vector<1x16x256xf32>
    tpu.vector_store %arg17[%c0_87, %c0_88, %c0_89], %106 {strides = array<i32>} : memref<1x16x256xf32, #tpu.memory_space<vmem>>, vector<1x16x256xf32>,
    return
  }
  func.func @transform_0(%arg0: i32) -> (i32, i32, i32) {
    %c0_i32 = arith.constant 0 : i32
    %c0_i32_0 = arith.constant 0 : i32
    %c0_i32_1 = arith.constant 0 : i32
    return %arg0, %c0_i32, %c0_i32_0 : i32, i32, i32
  }
  func.func @transform_1(%arg0: i32) -> (i32, i32, i32) {
    %c0_i32 = arith.constant 0 : i32
    %c0_i32_0 = arith.constant 0 : i32
    %c0_i32_1 = arith.constant 0 : i32
    %c0_i32_2 = arith.constant 0 : i32
    return %c0_i32, %c0_i32_0, %c0_i32_1 : i32, i32, i32
  }
  func.func @transform_2(%arg0: i32) -> (i32, i32) {
    %c0_i32 = arith.constant 0 : i32
    %c0_i32_0 = arith.constant 0 : i32
    %c0_i32_1 = arith.constant 0 : i32
    return %c0_i32, %c0_i32_0 : i32, i32
  }
  func.func @transform_3(%arg0: i32) -> (i32, i32, i32) {
    %c0_i32 = arith.constant 0 : i32
    %c0_i32_0 = arith.constant 0 : i32
    %c0_i32_1 = arith.constant 0 : i32
    %c0_i32_2 = arith.constant 0 : i32
    return %c0_i32, %c0_i32_0, %c0_i32_1 : i32, i32, i32
  }
  func.func @transform_4(%arg0: i32) -> (i32, i32) {
    %c0_i32 = arith.constant 0 : i32
    %c0_i32_0 = arith.constant 0 : i32
    %c0_i32_1 = arith.constant 0 : i32
    return %c0_i32, %c0_i32_0 : i32, i32
  }
  func.func @transform_5(%arg0: i32) -> (i32, i32) {
    %c0_i32 = arith.constant 0 : i32
    %c0_i32_0 = arith.constant 0 : i32
    %c0_i32_1 = arith.constant 0 : i32
    return %c0_i32, %c0_i32_0 : i32, i32
  }
  func.func @transform_6(%arg0: i32) -> (i32, i32) {
    %c0_i32 = arith.constant 0 : i32
    %c0_i32_0 = arith.constant 0 : i32
    %c0_i32_1 = arith.constant 0 : i32
    return %c0_i32, %c0_i32_0 : i32, i32
  }
  func.func @transform_7(%arg0: i32) -> (i32, i32) {
    %c0_i32 = arith.constant 0 : i32
    %c0_i32_0 = arith.constant 0 : i32
    %c0_i32_1 = arith.constant 0 : i32
    return %c0_i32, %c0_i32_0 : i32, i32
  }
  func.func @transform_8(%arg0: i32) -> (i32, i32) {
    %c0_i32 = arith.constant 0 : i32
    %c0_i32_0 = arith.constant 0 : i32
    %c0_i32_1 = arith.constant 0 : i32
    return %c0_i32, %c0_i32_0 : i32, i32
  }
  func.func @transform_9(%arg0: i32) -> (i32, i32) {
    %c0_i32 = arith.constant 0 : i32
    %c0_i32_0 = arith.constant 0 : i32
    %c0_i32_1 = arith.constant 0 : i32
    return %c0_i32, %c0_i32_0 : i32, i32
  }
  func.func @transform_10(%arg0: i32) -> (i32, i32) {
    %c0_i32 = arith.constant 0 : i32
    %c0_i32_0 = arith.constant 0 : i32
    %c0_i32_1 = arith.constant 0 : i32
    return %c0_i32, %c0_i32_0 : i32, i32
  }
  func.func @transform_11(%arg0: i32) -> (i32, i32) {
    %c0_i32 = arith.constant 0 : i32
    %c0_i32_0 = arith.constant 0 : i32
    %c0_i32_1 = arith.constant 0 : i32
    return %c0_i32, %c0_i32_0 : i32, i32
  }
  func.func @transform_12(%arg0: i32) -> (i32, i32) {
    %c0_i32 = arith.constant 0 : i32
    %c0_i32_0 = arith.constant 0 : i32
    %c0_i32_1 = arith.constant 0 : i32
    return %c0_i32, %c0_i32_0 : i32, i32
  }
  func.func @transform_13(%arg0: i32) -> (i32, i32) {
    %c0_i32 = arith.constant 0 : i32
    %c0_i32_0 = arith.constant 0 : i32
    %c0_i32_1 = arith.constant 0 : i32
    return %c0_i32, %c0_i32_0 : i32, i32
  }
  func.func @transform_14(%arg0: i32) -> (i32, i32) {
    %c0_i32 = arith.constant 0 : i32
    %c0_i32_0 = arith.constant 0 : i32
    %c0_i32_1 = arith.constant 0 : i32
    return %c0_i32, %c0_i32_0 : i32, i32
  }
  func.func @transform_15(%arg0: i32) -> (i32, i32) {
    %c0_i32 = arith.constant 0 : i32
    %c0_i32_0 = arith.constant 0 : i32
    %c0_i32_1 = arith.constant 0 : i32
    return %c0_i32, %c0_i32_0 : i32, i32
  }
  func.func @transform_16(%arg0: i32) -> (i32, i32, i32) {
    %c0_i32 = arith.constant 0 : i32
    %c0_i32_0 = arith.constant 0 : i32
    %c0_i32_1 = arith.constant 0 : i32
    return %arg0, %c0_i32, %c0_i32_0 : i32, i32, i32
  }
}

</mosaic_0001>

<llo_original>
// kernel: dehaze_block.1
$region0: #{dehaze_block.1}
  #allocation0 [shape = 'u32[]', space=smem, size = 0x4, offset = 0x4, fixed_abs, tag = 'smem constant byte address 0x4 - core index']
  #allocation1 [shape = 'u32[144,128]{1,0:T(1,128)}', space=vmem, size = 0x12000, scoped, tag = 'internal scratch']
  #allocation2 [shape = 'f32[18,256]{1,0:T(8,128)}', space=vmem, size = 0x6000, scoped, tag = 'scratch operand']
  %s0 = inlined_call_operand.vmem [shape: f32[2,18,256], index: 0, kind: input, shape index: {}]
  %s1 = inlined_call_operand.vmem [shape: bf16[3,256,256], index: 1, kind: input, shape index: {}]
  %s2 = inlined_call_operand.vmem [shape: f32[1,256], index: 2, kind: input, shape index: {}]
  %s3 = inlined_call_operand.vmem [shape: bf16[3,256,256], index: 3, kind: input, shape index: {}]
  %s4 = inlined_call_operand.vmem [shape: f32[1,256], index: 4, kind: input, shape index: {}]
  %s5 = inlined_call_operand.vmem [shape: f32[256,16], index: 5, kind: input, shape index: {}]
  %s6 = inlined_call_operand.vmem [shape: f32[16,2], index: 6, kind: input, shape index: {}]
  %s7 = inlined_call_operand.vmem [shape: f32[1,2], index: 7, kind: input, shape index: {}]
  %s8 = inlined_call_operand.vmem [shape: f32[2,16], index: 8, kind: input, shape index: {}]
  %s9 = inlined_call_operand.vmem [shape: f32[1,16], index: 9, kind: input, shape index: {}]
  %s10 = inlined_call_operand.vmem [shape: f32[16,256], index: 10, kind: input, shape index: {}]
  %s11 = inlined_call_operand.vmem [shape: bf16[256,32], index: 11, kind: input, shape index: {}]
  %s12 = inlined_call_operand.vmem [shape: f32[1,32], index: 12, kind: input, shape index: {}]
  %s13 = inlined_call_operand.vmem [shape: f32[32,16], index: 13, kind: input, shape index: {}]
  %s14 = inlined_call_operand.vmem [shape: f32[1,16], index: 14, kind: input, shape index: {}]
  %s15 = inlined_call_operand.vmem [shape: f32[16,256], index: 15, kind: input, shape index: {}]
  %s16 = inlined_call_operand.vmem [shape: f32[2,16,256], index: 16, kind: output, shape index: {}]
  %s17 = sld [smem:[#allocation0]]
  $region97: #{dehaze_block.1} parent=0
    _
  %s19 = ssub.s32 1, %s17
  %s20 = scalar_select 0, %s19, %s17
  loop: start=0, step=1, limit=4
  $region2: #{dehaze_block.1} parent=0 // loop_pre_header
    _
  $region3: #{dehaze_block.1} parent=0 // loop_header
    %s22 = sphi 0, %s26
    %p23 = scmp.ge.s32.totalorder %s22, 4
    %s32 = sphi 0, %s34
    %s35 = sphi 0, %s32
    %s36 = sphi 0, %s35
    %s52 = sphi 0, %s36
    %s56 = sphi 0, %s56
    %s58 = sphi 0, %s56
    %s59 = sphi 0, %s58
    %s73 = sphi 0, %s59
    %s77 = sphi 0, %s77
    %s79 = sphi 0, %s77
    %s80 = sphi 0, %s79
    %s94 = sphi 0, %s80
    %s98 = sphi 0, %s98
    %s100 = sphi 0, %s98
    %s101 = sphi 0, %s100
    %s115 = sphi 0, %s101
    %s119 = sphi 0, %s119
    %s121 = sphi 0, %s119
    %s122 = sphi 0, %s121
    %s136 = sphi 0, %s122
    %s140 = sphi 0, %s140
    %s142 = sphi 0, %s140
    %s143 = sphi 0, %s142
    %s157 = sphi 0, %s143
    %s161 = sphi 0, %s161
    %s163 = sphi 0, %s161
    %s164 = sphi 0, %s163
    %s178 = sphi 0, %s164
    %s182 = sphi 0, %s182
    %s184 = sphi 0, %s182
    %s185 = sphi 0, %s184
    %s199 = sphi 0, %s185
    %s203 = sphi 0, %s203
    %s205 = sphi 0, %s203
    %s206 = sphi 0, %s205
    %s220 = sphi 0, %s206
    %s224 = sphi 0, %s224
    %s226 = sphi 0, %s224
    %s227 = sphi 0, %s226
    %s241 = sphi 0, %s227
    %s245 = sphi 0, %s245
    %s247 = sphi 0, %s245
    %s248 = sphi 0, %s247
    %s262 = sphi 0, %s248
    %s266 = sphi 0, %s266
    %s268 = sphi 0, %s266
    %s269 = sphi 0, %s268
    %s283 = sphi 0, %s269
    %s287 = sphi 0, %s287
    %s289 = sphi 0, %s287
    %s290 = sphi 0, %s289
    %s304 = sphi 0, %s290
    %s308 = sphi 0, %s308
    %s310 = sphi 0, %s308
    %s311 = sphi 0, %s310
    %s325 = sphi 0, %s311
    %s329 = sphi 0, %s329
    %s331 = sphi 0, %s329
    %s332 = sphi 0, %s331
    %s346 = sphi 0, %s332
    %s350 = sphi 0, %s350
    %s352 = sphi 0, %s350
    %s353 = sphi 0, %s352
    %s367 = sphi 0, %s353
    %s373 = sphi 0, %s375
    %s376 = sphi 0, %s373
    %s377 = sphi 0, %s376
    %s393 = sphi 0, %s377
  $region4: #{dehaze_block.1} parent=0 // loop_header_branch
    %25 = sbr.rel (%p23) target = $region8
  $region5: #{dehaze_block.1} parent=0 // loop_body
    %s27 = ssub.s32 %s22, 1
    %s28 = ssub.s32 %s22, 2
    %s29 = sadd.s32 %s22, 1
    %s30 = ssub.s32 %s22, %s29
    %p31 = scmp.eq.s32.totalorder %s30, 0
    %s33 = sadd.s32 %s32, 1
    %s34 = scalar_select %p31, %s32, %s33
    %p37 = pneg %p31
    %p38 = scmp.eq.s32.totalorder %s22, 1
    %p39 = por %p37, %p38
    %p40 = scmp.ne.s32.totalorder %s32, %s35
    %p41 = scmp.eq.s32.totalorder %s22, 0
    %p42 = por %p40, %p41
    %p43 = scmp.ne.s32.totalorder %s32, %s35
    %p44 = scmp.eq.s32.totalorder %s27, 1
    %p45 = por %p43, %p44
    %p46 = scmp.ne.s32.totalorder %s35, %s36
    %p47 = scmp.eq.s32.totalorder %s27, 0
    %p48 = por %p46, %p47
    %p49 = scmp.ne.s32.totalorder %s35, %s36
    %p50 = scmp.eq.s32.totalorder %s28, 1
    %p51 = por %p49, %p50
    %p53 = scmp.ne.s32.totalorder %s36, %s52
    %p54 = scmp.eq.s32.totalorder %s28, 0
    %p55 = por %p53, %p54
    %s57 = sadd.s32 %s56, 1
    %p60 = scmp.eq.s32.totalorder %s22, 1
    %p61 = scmp.ne.s32.totalorder %s56, %s58
    %p62 = scmp.eq.s32.totalorder %s22, 0
    %p63 = por %p61, %p62
    %p64 = scmp.ne.s32.totalorder %s56, %s58
    %p65 = scmp.eq.s32.totalorder %s27, 1
    %p66 = por %p64, %p65
    %p67 = scmp.ne.s32.totalorder %s58, %s59
    %p68 = scmp.eq.s32.totalorder %s27, 0
    %p69 = por %p67, %p68
    %p70 = scmp.ne.s32.totalorder %s58, %s59
    %p71 = scmp.eq.s32.totalorder %s28, 1
    %p72 = por %p70, %p71
    %p74 = scmp.ne.s32.totalorder %s59, %s73
    %p75 = scmp.eq.s32.totalorder %s28, 0
    %p76 = por %p74, %p75
    %s78 = sadd.s32 %s77, 1
    %p81 = scmp.eq.s32.totalorder %s22, 1
    %p82 = scmp.ne.s32.totalorder %s77, %s79
    %p83 = scmp.eq.s32.totalorder %s22, 0
    %p84 = por %p82, %p83
    %p85 = scmp.ne.s32.totalorder %s77, %s79
    %p86 = scmp.eq.s32.totalorder %s27, 1
    %p87 = por %p85, %p86
    %p88 = scmp.ne.s32.totalorder %s79, %s80
    %p89 = scmp.eq.s32.totalorder %s27, 0
    %p90 = por %p88, %p89
    %p91 = scmp.ne.s32.totalorder %s79, %s80
    %p92 = scmp.eq.s32.totalorder %s28, 1
    %p93 = por %p91, %p92
    %p95 = scmp.ne.s32.totalorder %s80, %s94
    %p96 = scmp.eq.s32.totalorder %s28, 0
    %p97 = por %p95, %p96
    %s99 = sadd.s32 %s98, 1
    %p102 = scmp.eq.s32.totalorder %s22, 1
    %p103 = scmp.ne.s32.totalorder %s98, %s100
    %p104 = scmp.eq.s32.totalorder %s22, 0
    %p105 = por %p103, %p104
    %p106 = scmp.ne.s32.totalorder %s98, %s100
    %p107 = scmp.eq.s32.totalorder %s27, 1
    %p108 = por %p106, %p107
    %p109 = scmp.ne.s32.totalorder %s100, %s101
    %p110 = scmp.eq.s32.totalorder %s27, 0
    %p111 = por %p109, %p110
    %p112 = scmp.ne.s32.totalorder %s100, %s101
    %p113 = scmp.eq.s32.totalorder %s28, 1
    %p114 = por %p112, %p113
    %p116 = scmp.ne.s32.totalorder %s101, %s115
    %p117 = scmp.eq.s32.totalorder %s28, 0
    %p118 = por %p116, %p117
    %s120 = sadd.s32 %s119, 1
    %p123 = scmp.eq.s32.totalorder %s22, 1
    %p124 = scmp.ne.s32.totalorder %s119, %s121
    %p125 = scmp.eq.s32.totalorder %s22, 0
    %p126 = por %p124, %p125
    %p127 = scmp.ne.s32.totalorder %s119, %s121
    %p128 = scmp.eq.s32.totalorder %s27, 1
    %p129 = por %p127, %p128
    %p130 = scmp.ne.s32.totalorder %s121, %s122
    %p131 = scmp.eq.s32.totalorder %s27, 0
    %p132 = por %p130, %p131
    %p133 = scmp.ne.s32.totalorder %s121, %s122
    %p134 = scmp.eq.s32.totalorder %s28, 1
    %p135 = por %p133, %p134
    %p137 = scmp.ne.s32.totalorder %s122, %s136
    %p138 = scmp.eq.s32.totalorder %s28, 0
    %p139 = por %p137, %p138
    %s141 = sadd.s32 %s140, 1
    %p144 = scmp.eq.s32.totalorder %s22, 1
    %p145 = scmp.ne.s32.totalorder %s140, %s142
    %p146 = scmp.eq.s32.totalorder %s22, 0
    %p147 = por %p145, %p146
    %p148 = scmp.ne.s32.totalorder %s140, %s142
    %p149 = scmp.eq.s32.totalorder %s27, 1
    %p150 = por %p148, %p149
    %p151 = scmp.ne.s32.totalorder %s142, %s143
    %p152 = scmp.eq.s32.totalorder %s27, 0
    %p153 = por %p151, %p152
    %p154 = scmp.ne.s32.totalorder %s142, %s143
    %p155 = scmp.eq.s32.totalorder %s28, 1
    %p156 = por %p154, %p155
    %p158 = scmp.ne.s32.totalorder %s143, %s157
    %p159 = scmp.eq.s32.totalorder %s28, 0
    %p160 = por %p158, %p159
    %s162 = sadd.s32 %s161, 1
    %p165 = scmp.eq.s32.totalorder %s22, 1
    %p166 = scmp.ne.s32.totalorder %s161, %s163
    %p167 = scmp.eq.s32.totalorder %s22, 0
    %p168 = por %p166, %p167
    %p169 = scmp.ne.s32.totalorder %s161, %s163
    %p170 = scmp.eq.s32.totalorder %s27, 1
    %p171 = por %p169, %p170
    %p172 = scmp.ne.s32.totalorder %s163, %s164
    %p173 = scmp.eq.s32.totalorder %s27, 0
    %p174 = por %p172, %p173
    %p175 = scmp.ne.s32.totalorder %s163, %s164
    %p176 = scmp.eq.s32.totalorder %s28, 1
    %p177 = por %p175, %p176
    %p179 = scmp.ne.s32.totalorder %s164, %s178
    %p180 = scmp.eq.s32.totalorder %s28, 0
    %p181 = por %p179, %p180
    %s183 = sadd.s32 %s182, 1
    %p186 = scmp.eq.s32.totalorder %s22, 1
    %p187 = scmp.ne.s32.totalorder %s182, %s184
    %p188 = scmp.eq.s32.totalorder %s22, 0
    %p189 = por %p187, %p188
    %p190 = scmp.ne.s32.totalorder %s182, %s184
    %p191 = scmp.eq.s32.totalorder %s27, 1
    %p192 = por %p190, %p191
    %p193 = scmp.ne.s32.totalorder %s184, %s185
    %p194 = scmp.eq.s32.totalorder %s27, 0
    %p195 = por %p193, %p194
    %p196 = scmp.ne.s32.totalorder %s184, %s185
    %p197 = scmp.eq.s32.totalorder %s28, 1
    %p198 = por %p196, %p197
    %p200 = scmp.ne.s32.totalorder %s185, %s199
    %p201 = scmp.eq.s32.totalorder %s28, 0
    %p202 = por %p200, %p201
    %s204 = sadd.s32 %s203, 1
    %p207 = scmp.eq.s32.totalorder %s22, 1
    %p208 = scmp.ne.s32.totalorder %s203, %s205
    %p209 = scmp.eq.s32.totalorder %s22, 0
    %p210 = por %p208, %p209
    %p211 = scmp.ne.s32.totalorder %s203, %s205
    %p212 = scmp.eq.s32.totalorder %s27, 1
    %p213 = por %p211, %p212
    %p214 = scmp.ne.s32.totalorder %s205, %s206
    %p215 = scmp.eq.s32.totalorder %s27, 0
    %p216 = por %p214, %p215
    %p217 = scmp.ne.s32.totalorder %s205, %s206
    %p218 = scmp.eq.s32.totalorder %s28, 1
    %p219 = por %p217, %p218
    %p221 = scmp.ne.s32.totalorder %s206, %s220
    %p222 = scmp.eq.s32.totalorder %s28, 0
    %p223 = por %p221, %p222
    %s225 = sadd.s32 %s224, 1
    %p228 = scmp.eq.s32.totalorder %s22, 1
    %p229 = scmp.ne.s32.totalorder %s224, %s226
    %p230 = scmp.eq.s32.totalorder %s22, 0
    %p231 = por %p229, %p230
    %p232 = scmp.ne.s32.totalorder %s224, %s226
    %p233 = scmp.eq.s32.totalorder %s27, 1
    %p234 = por %p232, %p233
    %p235 = scmp.ne.s32.totalorder %s226, %s227
    %p236 = scmp.eq.s32.totalorder %s27, 0
    %p237 = por %p235, %p236
    %p238 = scmp.ne.s32.totalorder %s226, %s227
    %p239 = scmp.eq.s32.totalorder %s28, 1
    %p240 = por %p238, %p239
    %p242 = scmp.ne.s32.totalorder %s227, %s241
    %p243 = scmp.eq.s32.totalorder %s28, 0
    %p244 = por %p242, %p243
    %s246 = sadd.s32 %s245, 1
    %p249 = scmp.eq.s32.totalorder %s22, 1
    %p250 = scmp.ne.s32.totalorder %s245, %s247
    %p251 = scmp.eq.s32.totalorder %s22, 0
    %p252 = por %p250, %p251
    %p253 = scmp.ne.s32.totalorder %s245, %s247
    %p254 = scmp.eq.s32.totalorder %s27, 1
    %p255 = por %p253, %p254
    %p256 = scmp.ne.s32.totalorder %s247, %s248
    %p257 = scmp.eq.s32.totalorder %s27, 0
    %p258 = por %p256, %p257
    %p259 = scmp.ne.s32.totalorder %s247, %s248
    %p260 = scmp.eq.s32.totalorder %s28, 1
    %p261 = por %p259, %p260
    %p263 = scmp.ne.s32.totalorder %s248, %s262
    %p264 = scmp.eq.s32.totalorder %s28, 0
    %p265 = por %p263, %p264
    %s267 = sadd.s32 %s266, 1
    %p270 = scmp.eq.s32.totalorder %s22, 1
    %p271 = scmp.ne.s32.totalorder %s266, %s268
    %p272 = scmp.eq.s32.totalorder %s22, 0
    %p273 = por %p271, %p272
    %p274 = scmp.ne.s32.totalorder %s266, %s268
    %p275 = scmp.eq.s32.totalorder %s27, 1
    %p276 = por %p274, %p275
    %p277 = scmp.ne.s32.totalorder %s268, %s269
    %p278 = scmp.eq.s32.totalorder %s27, 0
    %p279 = por %p277, %p278
    %p280 = scmp.ne.s32.totalorder %s268, %s269
    %p281 = scmp.eq.s32.totalorder %s28, 1
    %p282 = por %p280, %p281
    %p284 = scmp.ne.s32.totalorder %s269, %s283
    %p285 = scmp.eq.s32.totalorder %s28, 0
    %p286 = por %p284, %p285
    %s288 = sadd.s32 %s287, 1
    %p291 = scmp.eq.s32.totalorder %s22, 1
    %p292 = scmp.ne.s32.totalorder %s287, %s289
    %p293 = scmp.eq.s32.totalorder %s22, 0
    %p294 = por %p292, %p293
    %p295 = scmp.ne.s32.totalorder %s287, %s289
    %p296 = scmp.eq.s32.totalorder %s27, 1
    %p297 = por %p295, %p296
    %p298 = scmp.ne.s32.totalorder %s289, %s290
    %p299 = scmp.eq.s32.totalorder %s27, 0
    %p300 = por %p298, %p299
    %p301 = scmp.ne.s32.totalorder %s289, %s290
    %p302 = scmp.eq.s32.totalorder %s28, 1
    %p303 = por %p301, %p302
    %p305 = scmp.ne.s32.totalorder %s290, %s304
    %p306 = scmp.eq.s32.totalorder %s28, 0
    %p307 = por %p305, %p306
    %s309 = sadd.s32 %s308, 1
    %p312 = scmp.eq.s32.totalorder %s22, 1
    %p313 = scmp.ne.s32.totalorder %s308, %s310
    %p314 = scmp.eq.s32.totalorder %s22, 0
    %p315 = por %p313, %p314
    %p316 = scmp.ne.s32.totalorder %s308, %s310
    %p317 = scmp.eq.s32.totalorder %s27, 1
    %p318 = por %p316, %p317
    %p319 = scmp.ne.s32.totalorder %s310, %s311
    %p320 = scmp.eq.s32.totalorder %s27, 0
    %p321 = por %p319, %p320
    %p322 = scmp.ne.s32.totalorder %s310, %s311
    %p323 = scmp.eq.s32.totalorder %s28, 1
    %p324 = por %p322, %p323
    %p326 = scmp.ne.s32.totalorder %s311, %s325
    %p327 = scmp.eq.s32.totalorder %s28, 0
    %p328 = por %p326, %p327
    %s330 = sadd.s32 %s329, 1
    %p333 = scmp.eq.s32.totalorder %s22, 1
    %p334 = scmp.ne.s32.totalorder %s329, %s331
    %p335 = scmp.eq.s32.totalorder %s22, 0
    %p336 = por %p334, %p335
    %p337 = scmp.ne.s32.totalorder %s329, %s331
    %p338 = scmp.eq.s32.totalorder %s27, 1
    %p339 = por %p337, %p338
    %p340 = scmp.ne.s32.totalorder %s331, %s332
    %p341 = scmp.eq.s32.totalorder %s27, 0
    %p342 = por %p340, %p341
    %p343 = scmp.ne.s32.totalorder %s331, %s332
    %p344 = scmp.eq.s32.totalorder %s28, 1
    %p345 = por %p343, %p344
    %p347 = scmp.ne.s32.totalorder %s332, %s346
    %p348 = scmp.eq.s32.totalorder %s28, 0
    %p349 = por %p347, %p348
    %s351 = sadd.s32 %s350, 1
    %p354 = scmp.eq.s32.totalorder %s22, 1
    %p355 = scmp.ne.s32.totalorder %s350, %s352
    %p356 = scmp.eq.s32.totalorder %s22, 0
    %p357 = por %p355, %p356
    %p358 = scmp.ne.s32.totalorder %s350, %s352
    %p359 = scmp.eq.s32.totalorder %s27, 1
    %p360 = por %p358, %p359
    %p361 = scmp.ne.s32.totalorder %s352, %s353
    %p362 = scmp.eq.s32.totalorder %s27, 0
    %p363 = por %p361, %p362
    %p364 = scmp.ne.s32.totalorder %s352, %s353
    %p365 = scmp.eq.s32.totalorder %s28, 1
    %p366 = por %p364, %p365
    %p368 = scmp.ne.s32.totalorder %s353, %s367
    %p369 = scmp.eq.s32.totalorder %s28, 0
    %p370 = por %p368, %p369
    %s371 = ssub.s32 %s22, %s29
    %p372 = scmp.eq.s32.totalorder %s371, 0
    %s374 = sadd.s32 %s373, 1
    %s375 = scalar_select %p372, %s373, %s374
    %p378 = pneg %p372
    %p379 = scmp.eq.s32.totalorder %s22, 1
    %p380 = por %p378, %p379
    %p381 = scmp.ne.s32.totalorder %s373, %s376
    %p382 = scmp.eq.s32.totalorder %s22, 0
    %p383 = por %p381, %p382
    %p384 = scmp.ne.s32.totalorder %s373, %s376
    %p385 = scmp.eq.s32.totalorder %s27, 1
    %p386 = por %p384, %p385
    %p387 = scmp.ne.s32.totalorder %s376, %s377
    %p388 = scmp.eq.s32.totalorder %s27, 0
    %p389 = por %p387, %p388
    %p390 = scmp.ne.s32.totalorder %s376, %s377
    %p391 = scmp.eq.s32.totalorder %s28, 1
    %p392 = por %p390, %p391
    %p394 = scmp.ne.s32.totalorder %s377, %s393
    %p395 = scmp.eq.s32.totalorder %s28, 0
    %p396 = por %p394, %p395
    %p397 = scmp.le.s32.totalorder 1, %s22
    %p398 = scmp.lt.s32.totalorder %s22, 3
    %p399 = pnand %p397, %p398
    %p400 = pneg %p399
    // Predicated region
    $region9: #{dehaze_block.1} parent=5 // pred_check
      _
    $region10: #{dehaze_block.1} parent=5 // pred_check_branch
      %402 = sbr.rel (%p399) target = $region12
    $region11: #{dehaze_block.1} parent=5 // pred_region
      %s403 = ssub.s32 %s22, 1
      // Predicated region
      $region13: #{dehaze_block.1} parent=11 // pred_check
        %p404 = pneg %p69
      $region14: #{dehaze_block.1} parent=11 // pred_check_branch
        %406 = sbr.rel (%p404) target = $region16
      $region15: #{dehaze_block.1} parent=11 // pred_region
        _
      $region16: #{dehaze_block.1} parent=11 // pred_fallthru
        _
      // Predicated region
      $region17: #{dehaze_block.1} parent=11 // pred_check
        %p407 = pneg %p90
      $region18: #{dehaze_block.1} parent=11 // pred_check_branch
        %409 = sbr.rel (%p407) target = $region20
      $region19: #{dehaze_block.1} parent=11 // pred_region
        _
      $region20: #{dehaze_block.1} parent=11 // pred_fallthru
        _
      // Predicated region
      $region21: #{dehaze_block.1} parent=11 // pred_check
        %p410 = pneg %p111
      $region22: #{dehaze_block.1} parent=11 // pred_check_branch
        %412 = sbr.rel (%p410) target = $region24
      $region23: #{dehaze_block.1} parent=11 // pred_region
        _
      $region24: #{dehaze_block.1} parent=11 // pred_fallthru
        _
      // Predicated region
      $region25: #{dehaze_block.1} parent=11 // pred_check
        %p413 = pneg %p132
      $region26: #{dehaze_block.1} parent=11 // pred_check_branch
        %415 = sbr.rel (%p413) target = $region28
      $region27: #{dehaze_block.1} parent=11 // pred_region
        _
      $region28: #{dehaze_block.1} parent=11 // pred_fallthru
        _
      // Predicated region
      $region29: #{dehaze_block.1} parent=11 // pred_check
        %p416 = pneg %p153
      $region30: #{dehaze_block.1} parent=11 // pred_check_branch
        %418 = sbr.rel (%p416) target = $region32
      $region31: #{dehaze_block.1} parent=11 // pred_region
        _
      $region32: #{dehaze_block.1} parent=11 // pred_fallthru
        _
      // Predicated region
      $region33: #{dehaze_block.1} parent=11 // pred_check
        %p419 = pneg %p174
      $region34: #{dehaze_block.1} parent=11 // pred_check_branch
        %421 = sbr.rel (%p419) target = $region36
      $region35: #{dehaze_block.1} parent=11 // pred_region
        _
      $region36: #{dehaze_block.1} parent=11 // pred_fallthru
        _
      // Predicated region
      $region37: #{dehaze_block.1} parent=11 // pred_check
        %p422 = pneg %p195
      $region38: #{dehaze_block.1} parent=11 // pred_check_branch
        %424 = sbr.rel (%p422) target = $region40
      $region39: #{dehaze_block.1} parent=11 // pred_region
        _
      $region40: #{dehaze_block.1} parent=11 // pred_fallthru
        _
      // Predicated region
      $region41: #{dehaze_block.1} parent=11 // pred_check
        %p425 = pneg %p216
      $region42: #{dehaze_block.1} parent=11 // pred_check_branch
        %427 = sbr.rel (%p425) target = $region44
      $region43: #{dehaze_block.1} parent=11 // pred_region
        _
      $region44: #{dehaze_block.1} parent=11 // pred_fallthru
        _
      // Predicated region
      $region45: #{dehaze_block.1} parent=11 // pred_check
        %p428 = pneg %p237
      $region46: #{dehaze_block.1} parent=11 // pred_check_branch
        %430 = sbr.rel (%p428) target = $region48
      $region47: #{dehaze_block.1} parent=11 // pred_region
        _
      $region48: #{dehaze_block.1} parent=11 // pred_fallthru
        _
      // Predicated region
      $region49: #{dehaze_block.1} parent=11 // pred_check
        %p431 = pneg %p258
      $region50: #{dehaze_block.1} parent=11 // pred_check_branch
        %433 = sbr.rel (%p431) target = $region52
      $region51: #{dehaze_block.1} parent=11 // pred_region
        _
      $region52: #{dehaze_block.1} parent=11 // pred_fallthru
        _
      // Predicated region
      $region53: #{dehaze_block.1} parent=11 // pred_check
        %p434 = pneg %p279
      $region54: #{dehaze_block.1} parent=11 // pred_check_branch
        %436 = sbr.rel (%p434) target = $region56
      $region55: #{dehaze_block.1} parent=11 // pred_region
        _
      $region56: #{dehaze_block.1} parent=11 // pred_fallthru
        _
      // Predicated region
      $region57: #{dehaze_block.1} parent=11 // pred_check
        %p437 = pneg %p300
      $region58: #{dehaze_block.1} parent=11 // pred_check_branch
        %439 = sbr.rel (%p437) target = $region60
      $region59: #{dehaze_block.1} parent=11 // pred_region
        _
      $region60: #{dehaze_block.1} parent=11 // pred_fallthru
        _
      // Predicated region
      $region61: #{dehaze_block.1} parent=11 // pred_check
        %p440 = pneg %p321
      $region62: #{dehaze_block.1} parent=11 // pred_check_branch
        %442 = sbr.rel (%p440) target = $region64
      $region63: #{dehaze_block.1} parent=11 // pred_region
        _
      $region64: #{dehaze_block.1} parent=11 // pred_fallthru
        _
      // Predicated region
      $region65: #{dehaze_block.1} parent=11 // pred_check
        %p443 = pneg %p342
      $region66: #{dehaze_block.1} parent=11 // pred_check_branch
        %445 = sbr.rel (%p443) target = $region68
      $region67: #{dehaze_block.1} parent=11 // pred_region
        _
      $region68: #{dehaze_block.1} parent=11 // pred_fallthru
        _
      // Predicated region
      $region69: #{dehaze_block.1} parent=11 // pred_check
        %p446 = pneg %p363
      $region70: #{dehaze_block.1} parent=11 // pred_check_branch
        %448 = sbr.rel (%p446) target = $region72
      $region71: #{dehaze_block.1} parent=11 // pred_region
        _
      $region72: #{dehaze_block.1} parent=11 // pred_fallthru
        _
    $region12: #{dehaze_block.1} parent=5 // pred_fallthru
      _
    %p449 = scmp.lt.s32.totalorder %s22, 2
    // Predicated region
    $region73: #{dehaze_block.1} parent=5 // pred_check
      %p450 = pneg %p449
    $region74: #{dehaze_block.1} parent=5 // pred_check_branch
      %452 = sbr.rel (%p450) target = $region76
    $region75: #{dehaze_block.1} parent=5 // pred_region
      // Predicated region
      $region77: #{dehaze_block.1} parent=75 // pred_check
        %p453 = pneg %p42
      $region78: #{dehaze_block.1} parent=75 // pred_check_branch
        %455 = sbr.rel (%p453) target = $region80
      $region79: #{dehaze_block.1} parent=75 // pred_region
        %p456 = scmp.lt.s32.totalorder %s22, 1
        %s457 = scalar_select %p456, %s22, 1
        %s458 = smul.addr %s457, 6
        %s459 = smul.addr %s458, 8
        %s460 = scalar_lea.vmem %s0, %s459
      $region80: #{dehaze_block.1} parent=75 // pred_fallthru
        _
    $region76: #{dehaze_block.1} parent=5 // pred_fallthru
      _
    %p461 = scmp.le.s32.totalorder 1, %s22
    %p462 = scmp.lt.s32.totalorder %s22, 3
    %p463 = pnand %p461, %p462
    %p464 = pneg %p463
    // Predicated region
    $region81: #{dehaze_block.1} parent=5 // pred_check
      _
    $region82: #{dehaze_block.1} parent=5 // pred_check_branch
      %466 = sbr.rel (%p463) target = $region84
    $region83: #{dehaze_block.1} parent=5 // pred_region
      %s467 = ssub.s32 %s22, 1
      %p468 = scmp.lt.s32.totalorder %s27, 1
      %s469 = scalar_select %p468, %s27, 1
      %s470 = smul.addr %s469, 6
      %s471 = smul.addr %s470, 8
      %s472 = scalar_lea.vmem %s0, %s471
      %p473 = pneg %p48
      %p474 = pneg %p45
      %p475 = pneg %p69
      %p476 = pneg %p66
      %p477 = pneg %p90
      %p478 = pneg %p87
      %p479 = pneg %p111
      %p480 = pneg %p108
      %p481 = pneg %p132
      %p482 = pneg %p129
      %p483 = pneg %p153
      %p484 = pneg %p150
      %p485 = pneg %p174
      %p486 = pneg %p171
      %p487 = pneg %p195
      %p488 = pneg %p192
      %p489 = pneg %p216
      %p490 = pneg %p213
      %p491 = pneg %p237
      %p492 = pneg %p234
      %p493 = pneg %p258
      %p494 = pneg %p255
      %p495 = pneg %p279
      %p496 = pneg %p276
      %p497 = pneg %p300
      %p498 = pneg %p297
      %p499 = pneg %p321
      %p500 = pneg %p318
      %p501 = pneg %p342
      %p502 = pneg %p339
      %p503 = pneg %p363
      %p504 = pneg %p360
      %p505 = pneg %p389
      %p506 = pneg %p386
      %p507 = scmp.lt.s32.totalorder %s27, 1
      %s508 = scalar_select %p507, %s27, 1
      %s509 = smul.addr %s508, 4
      %s510 = smul.addr %s509, 8
      %s511 = scalar_lea.vmem %s16, %s510
      %p512 = scmp.lt.s32.totalorder %s27, 1
      %s513 = scalar_select %p512, %s27, 1
      %s514 = smul.addr %s513, 6
      %s515 = smul.addr %s514, 8
      %s516 = scalar_lea.vmem %s0, %s515
      %p517 = scmp.lt.s32.totalorder %s27, 1
      %s518 = scalar_select %p517, %s27, 1
      %s519 = smul.addr %s518, 4
      %s520 = smul.addr %s519, 8
      %s521 = scalar_lea.vmem %s16, %s520
      %v523 = vld [vmem:[%s516] sm:$0xfe]
      %v524 = vld [vmem:[%s516 + $0x8] sm:$0xfe]
      %v525 = vld [vmem:[%s516 + $0x10] sm:$0xff]
      %v526 = vld [vmem:[%s516 + $0x18] sm:$0xff]
      %v527 = vld [vmem:[%s516 + $0x20] sm:$0x1]
      %v528 = vld [vmem:[%s516 + $0x28] sm:$0x1]
      %v529 = vld [vmem:[%s516] sm:$0xff]
      %v530 = vld [vmem:[%s516 + $0x8] sm:$0xff]
      %v531 = vpack.c.bf16 %v525, %v529
      %v532 = vpack.c.bf16 %v526, %v530
      %v533 = vld [vmem:[%s1] sm:$0xff]
      %v534 = vld [vmem:[%s1 + $0x8] sm:$0xff]
      %v535 = vld [vmem:[%s1 + $0x10] sm:$0xff]
      %v536 = vld [vmem:[%s1 + $0x18] sm:$0xff]
      %v537 = vld [vmem:[%s1 + $0x20] sm:$0xff]
      %v538 = vld [vmem:[%s1 + $0x28] sm:$0xff]
      %v539 = vld [vmem:[%s1 + $0x30] sm:$0xff]
      %v540 = vld [vmem:[%s1 + $0x38] sm:$0xff]
      %v541 = vld [vmem:[%s1 + $0x40] sm:$0xff]
      %v542 = vld [vmem:[%s1 + $0x48] sm:$0xff]
      %v543 = vld [vmem:[%s1 + $0x50] sm:$0xff]
      %v544 = vld [vmem:[%s1 + $0x58] sm:$0xff]
      %v545 = vld [vmem:[%s1 + $0x60] sm:$0xff]
      %v546 = vld [vmem:[%s1 + $0x68] sm:$0xff]
      %v547 = vld [vmem:[%s1 + $0x70] sm:$0xff]
      %v548 = vld [vmem:[%s1 + $0x78] sm:$0xff]
      %v549 = vld [vmem:[%s1 + $0x80] sm:$0xff]
      %v550 = vld [vmem:[%s1 + $0x88] sm:$0xff]
      %v551 = vld [vmem:[%s1 + $0x90] sm:$0xff]
      %v552 = vld [vmem:[%s1 + $0x98] sm:$0xff]
      %v553 = vld [vmem:[%s1 + $0xa0] sm:$0xff]
      %v554 = vld [vmem:[%s1 + $0xa8] sm:$0xff]
      %v555 = vld [vmem:[%s1 + $0xb0] sm:$0xff]
      %v556 = vld [vmem:[%s1 + $0xb8] sm:$0xff]
      %v557 = vld [vmem:[%s1 + $0xc0] sm:$0xff]
      %v558 = vld [vmem:[%s1 + $0xc8] sm:$0xff]
      %v559 = vld [vmem:[%s1 + $0xd0] sm:$0xff]
      %v560 = vld [vmem:[%s1 + $0xd8] sm:$0xff]
      %v561 = vld [vmem:[%s1 + $0xe0] sm:$0xff]
      %v562 = vld [vmem:[%s1 + $0xe8] sm:$0xff]
      %v563 = vld [vmem:[%s1 + $0xf0] sm:$0xff]
      %v564 = vld [vmem:[%s1 + $0xf8] sm:$0xff]
      %v565 = vpack.c.bf16 %v525, %v523
      %v566 = vpack.c.bf16 %v526, %v524
      %v567 = vpack.c.bf16 %v527, %v527
      %v568 = vpack.c.bf16 %v528, %v528
      %s569 = scalar_lea.vmem %s1, 256
      %v570 = vld [vmem:[%s569] sm:$0xff]
      %v571 = vld [vmem:[%s569 + $0x8] sm:$0xff]
      %v572 = vld [vmem:[%s569 + $0x10] sm:$0xff]
      %v573 = vld [vmem:[%s569 + $0x18] sm:$0xff]
      %v574 = vld [vmem:[%s569 + $0x20] sm:$0xff]
      %v575 = vld [vmem:[%s569 + $0x28] sm:$0xff]
      %v576 = vld [vmem:[%s569 + $0x30] sm:$0xff]
      %v577 = vld [vmem:[%s569 + $0x38] sm:$0xff]
      %v578 = vld [vmem:[%s569 + $0x40] sm:$0xff]
      %v579 = vld [vmem:[%s569 + $0x48] sm:$0xff]
      %v580 = vld [vmem:[%s569 + $0x50] sm:$0xff]
      %v581 = vld [vmem:[%s569 + $0x58] sm:$0xff]
      %v582 = vld [vmem:[%s569 + $0x60] sm:$0xff]
      %v583 = vld [vmem:[%s569 + $0x68] sm:$0xff]
      %v584 = vld [vmem:[%s569 + $0x70] sm:$0xff]
      %v585 = vld [vmem:[%s569 + $0x78] sm:$0xff]
      %v586 = vld [vmem:[%s569 + $0x80] sm:$0xff]
      %v587 = vld [vmem:[%s569 + $0x88] sm:$0xff]
      %v588 = vld [vmem:[%s569 + $0x90] sm:$0xff]
      %v589 = vld [vmem:[%s569 + $0x98] sm:$0xff]
      %v590 = vld [vmem:[%s569 + $0xa0] sm:$0xff]
      %v591 = vld [vmem:[%s569 + $0xa8] sm:$0xff]
      %v592 = vld [vmem:[%s569 + $0xb0] sm:$0xff]
      %v593 = vld [vmem:[%s569 + $0xb8] sm:$0xff]
      %v594 = vld [vmem:[%s569 + $0xc0] sm:$0xff]
      %v595 = vld [vmem:[%s569 + $0xc8] sm:$0xff]
      %v596 = vld [vmem:[%s569 + $0xd0] sm:$0xff]
      %v597 = vld [vmem:[%s569 + $0xd8] sm:$0xff]
      %v598 = vld [vmem:[%s569 + $0xe0] sm:$0xff]
      %v599 = vld [vmem:[%s569 + $0xe8] sm:$0xff]
      %v600 = vld [vmem:[%s569 + $0xf0] sm:$0xff]
      %v601 = vld [vmem:[%s569 + $0xf8] sm:$0xff]
      %vm602 = vsmask.f32 7424
      %v604 = vshrl.u32 %v565, 16
      %v606 = vshll.u32 %v565, 16
      %v608 = vrot.slane %v606, 1
      %v609 = vor.u32 %v604, %v608
      %v611 = vshll.u32 %v567, 16
      %v613 = vrot.slane %v611, 1
      %v614 = vsel %vm602, %v609, %v613
      %v616 = vshrl.u32 %v566, 16
      %v618 = vshll.u32 %v566, 16
      %v620 = vrot.slane %v618, 1
      %v621 = vor.u32 %v616, %v620
      %v623 = vshll.u32 %v568, 16
      %v625 = vrot.slane %v623, 1
      %v626 = vsel %vm602, %v621, %v625
      %v661 = vunpack.c.l.b16 %v570
      %v662 = vunpack.c.h.b16 %v570
      %v663 = vunpack.c.l.b16 %v571
      %v664 = vunpack.c.h.b16 %v571
      %v665 = vunpack.c.l.b16 %v572
      %v666 = vunpack.c.h.b16 %v572
      %v667 = vunpack.c.l.b16 %v573
      %v668 = vunpack.c.h.b16 %v573
      %v669 = vunpack.c.l.b16 %v574
      %v670 = vunpack.c.h.b16 %v574
      %v671 = vunpack.c.l.b16 %v575
      %v672 = vunpack.c.h.b16 %v575
      %v673 = vunpack.c.l.b16 %v576
      %v674 = vunpack.c.h.b16 %v576
      %v675 = vunpack.c.l.b16 %v577
      %v676 = vunpack.c.h.b16 %v577
      %v677 = vunpack.c.l.b16 %v578
      %v678 = vunpack.c.h.b16 %v578
      %v679 = vunpack.c.l.b16 %v579
      %v680 = vunpack.c.h.b16 %v579
      %v681 = vunpack.c.l.b16 %v580
      %v682 = vunpack.c.h.b16 %v580
      %v683 = vunpack.c.l.b16 %v581
      %v684 = vunpack.c.h.b16 %v581
      %v685 = vunpack.c.l.b16 %v582
      %v686 = vunpack.c.h.b16 %v582
      %v687 = vunpack.c.l.b16 %v583
      %v688 = vunpack.c.h.b16 %v583
      %v689 = vunpack.c.l.b16 %v584
      %v690 = vunpack.c.h.b16 %v584
      %v691 = vunpack.c.l.b16 %v585
      %v692 = vunpack.c.h.b16 %v585
      %v693 = vunpack.c.l.b16 %v586
      %v694 = vunpack.c.h.b16 %v586
      %v695 = vunpack.c.l.b16 %v587
      %v696 = vunpack.c.h.b16 %v587
      %v697 = vunpack.c.l.b16 %v588
      %v698 = vunpack.c.h.b16 %v588
      %v699 = vunpack.c.l.b16 %v589
      %v700 = vunpack.c.h.b16 %v589
      %v701 = vunpack.c.l.b16 %v590
      %v702 = vunpack.c.h.b16 %v590
      %v703 = vunpack.c.l.b16 %v591
      %v704 = vunpack.c.h.b16 %v591
      %v705 = vunpack.c.l.b16 %v592
      %v706 = vunpack.c.h.b16 %v592
      %v707 = vunpack.c.l.b16 %v593
      %v708 = vunpack.c.h.b16 %v593
      %v709 = vunpack.c.l.b16 %v594
      %v710 = vunpack.c.h.b16 %v594
      %v711 = vunpack.c.l.b16 %v595
      %v712 = vunpack.c.h.b16 %v595
      %v713 = vunpack.c.l.b16 %v596
      %v714 = vunpack.c.h.b16 %v596
      %v715 = vunpack.c.l.b16 %v597
      %v716 = vunpack.c.h.b16 %v597
      %v717 = vunpack.c.l.b16 %v598
      %v718 = vunpack.c.h.b16 %v598
      %v719 = vunpack.c.l.b16 %v599
      %v720 = vunpack.c.h.b16 %v599
      %v721 = vunpack.c.l.b16 %v600
      %v722 = vunpack.c.h.b16 %v600
      %v723 = vunpack.c.l.b16 %v601
      %v724 = vunpack.c.h.b16 %v601
      %v725 = vpack.c.b16 %v663, %v661
      %v726 = vpack.c.b16 %v664, %v662
      %v727 = vpack.c.b16 %v667, %v665
      %v728 = vpack.c.b16 %v668, %v666
      %v729 = vpack.c.b16 %v671, %v669
      %v730 = vpack.c.b16 %v672, %v670
      %v731 = vpack.c.b16 %v675, %v673
      %v732 = vpack.c.b16 %v676, %v674
      %v733 = vpack.c.b16 %v679, %v677
      %v734 = vpack.c.b16 %v680, %v678
      %v735 = vpack.c.b16 %v683, %v681
      %v736 = vpack.c.b16 %v684, %v682
      %v737 = vpack.c.b16 %v687, %v685
      %v738 = vpack.c.b16 %v688, %v686
      %v739 = vpack.c.b16 %v691, %v689
      %v740 = vpack.c.b16 %v692, %v690
      %v741 = vpack.c.b16 %v695, %v693
      %v742 = vpack.c.b16 %v696, %v694
      %v743 = vpack.c.b16 %v699, %v697
      %v744 = vpack.c.b16 %v700, %v698
      %v745 = vpack.c.b16 %v703, %v701
      %v746 = vpack.c.b16 %v704, %v702
      %v747 = vpack.c.b16 %v707, %v705
      %v748 = vpack.c.b16 %v708, %v706
      %v749 = vpack.c.b16 %v711, %v709
      %v750 = vpack.c.b16 %v712, %v710
      %v751 = vpack.c.b16 %v715, %v713
      %v752 = vpack.c.b16 %v716, %v714
      %v753 = vpack.c.b16 %v719, %v717
      %v754 = vpack.c.b16 %v720, %v718
      %v755 = vpack.c.b16 %v723, %v721
      %v756 = vpack.c.b16 %v724, %v722
      %789 = vmatprep.subr.bf16.mxu0 %v726
      %790 = vmatpush1.bf16.msra.mxu0 %v725
      %791 = vmatprep.subr.bf16.mxu0 %v728
      %792 = vmatpush1.bf16.msra.mxu0 %v727
      %793 = vmatprep.subr.bf16.mxu0 %v730
      %794 = vmatpush1.bf16.msra.mxu0 %v729
      %795 = vmatprep.subr.bf16.mxu0 %v732
      %796 = vmatpush1.bf16.msra.mxu0 %v731
      %797 = vmatprep.subr.bf16.mxu0 %v734
      %798 = vmatpush1.bf16.msra.mxu0 %v733
      %799 = vmatprep.subr.bf16.mxu0 %v736
      %800 = vmatpush1.bf16.msra.mxu0 %v735
      %801 = vmatprep.subr.bf16.mxu0 %v738
      %802 = vmatpush1.bf16.msra.mxu0 %v737
      %803 = vmatprep.subr.bf16.mxu0 %v740
      %804 = vmatpush1.bf16.msra.mxu0 %v739
      %805 = vmatprep.subr.bf16.mxu0 %v742
      %806 = vmatpush1.bf16.msra.mxu0 %v741
      %807 = vmatprep.subr.bf16.mxu0 %v744
      %808 = vmatpush1.bf16.msra.mxu0 %v743
      %809 = vmatprep.subr.bf16.mxu0 %v746
      %810 = vmatpush1.bf16.msra.mxu0 %v745
      %811 = vmatprep.subr.bf16.mxu0 %v748
      %812 = vmatpush1.bf16.msra.mxu0 %v747
      %813 = vmatprep.subr.bf16.mxu0 %v750
      %814 = vmatpush1.bf16.msra.mxu0 %v749
      %815 = vmatprep.subr.bf16.mxu0 %v752
      %816 = vmatpush1.bf16.msra.mxu0 %v751
      %817 = vmatprep.subr.bf16.mxu0 %v754
      %818 = vmatpush1.bf16.msra.mxu0 %v753
      %819 = vmatprep.subr.bf16.mxu0 %v756
      %820 = vmatpush1.bf16.msra.mxu0 %v755
      %821 = vmatprep.mubr.bf16.mxu0 %v626
      %822 = vmatmul.mubr.bf16.gmra.mrb[0].mxu0 %v614
      %v823 = vpop.f32.mrb[0].mxu0
      %v824 = vadd.f32 0.0, %v823
      %v825 = vpop.f32.mrb[0].mxu0
      %v826 = vadd.f32 0.0, %v825
      %v827 = vpop.f32.mrb[0].mxu0
      %v828 = vadd.f32 0.0, %v827
      %v829 = vpop.f32.mrb[0].mxu0
      %v830 = vadd.f32 0.0, %v829
      %831 = vdwg.mxu0
      %v864 = vunpack.c.l.b16 %v533
      %v865 = vunpack.c.h.b16 %v533
      %v866 = vunpack.c.l.b16 %v534
      %v867 = vunpack.c.h.b16 %v534
      %v868 = vunpack.c.l.b16 %v535
      %v869 = vunpack.c.h.b16 %v535
      %v870 = vunpack.c.l.b16 %v536
      %v871 = vunpack.c.h.b16 %v536
      %v872 = vunpack.c.l.b16 %v537
      %v873 = vunpack.c.h.b16 %v537
      %v874 = vunpack.c.l.b16 %v538
      %v875 = vunpack.c.h.b16 %v538
      %v876 = vunpack.c.l.b16 %v539
      %v877 = vunpack.c.h.b16 %v539
      %v878 = vunpack.c.l.b16 %v540
      %v879 = vunpack.c.h.b16 %v540
      %v880 = vunpack.c.l.b16 %v541
      %v881 = vunpack.c.h.b16 %v541
      %v882 = vunpack.c.l.b16 %v542
      %v883 = vunpack.c.h.b16 %v542
      %v884 = vunpack.c.l.b16 %v543
      %v885 = vunpack.c.h.b16 %v543
      %v886 = vunpack.c.l.b16 %v544
      %v887 = vunpack.c.h.b16 %v544
      %v888 = vunpack.c.l.b16 %v545
      %v889 = vunpack.c.h.b16 %v545
      %v890 = vunpack.c.l.b16 %v546
      %v891 = vunpack.c.h.b16 %v546
      %v892 = vunpack.c.l.b16 %v547
      %v893 = vunpack.c.h.b16 %v547
      %v894 = vunpack.c.l.b16 %v548
      %v895 = vunpack.c.h.b16 %v548
      %v896 = vunpack.c.l.b16 %v549
      %v897 = vunpack.c.h.b16 %v549
      %v898 = vunpack.c.l.b16 %v550
      %v899 = vunpack.c.h.b16 %v550
      %v900 = vunpack.c.l.b16 %v551
      %v901 = vunpack.c.h.b16 %v551
      %v902 = vunpack.c.l.b16 %v552
      %v903 = vunpack.c.h.b16 %v552
      %v904 = vunpack.c.l.b16 %v553
      %v905 = vunpack.c.h.b16 %v553
      %v906 = vunpack.c.l.b16 %v554
      %v907 = vunpack.c.h.b16 %v554
      %v908 = vunpack.c.l.b16 %v555
      %v909 = vunpack.c.h.b16 %v555
      %v910 = vunpack.c.l.b16 %v556
      %v911 = vunpack.c.h.b16 %v556
      %v912 = vunpack.c.l.b16 %v557
      %v913 = vunpack.c.h.b16 %v557
      %v914 = vunpack.c.l.b16 %v558
      %v915 = vunpack.c.h.b16 %v558
      %v916 = vunpack.c.l.b16 %v559
      %v917 = vunpack.c.h.b16 %v559
      %v918 = vunpack.c.l.b16 %v560
      %v919 = vunpack.c.h.b16 %v560
      %v920 = vunpack.c.l.b16 %v561
      %v921 = vunpack.c.h.b16 %v561
      %v922 = vunpack.c.l.b16 %v562
      %v923 = vunpack.c.h.b16 %v562
      %v924 = vunpack.c.l.b16 %v563
      %v925 = vunpack.c.h.b16 %v563
      %v926 = vunpack.c.l.b16 %v564
      %v927 = vunpack.c.h.b16 %v564
      %v928 = vpack.c.b16 %v866, %v864
      %v929 = vpack.c.b16 %v867, %v865
      %v930 = vpack.c.b16 %v870, %v868
      %v931 = vpack.c.b16 %v871, %v869
      %v932 = vpack.c.b16 %v874, %v872
      %v933 = vpack.c.b16 %v875, %v873
      %v934 = vpack.c.b16 %v878, %v876
      %v935 = vpack.c.b16 %v879, %v877
      %v936 = vpack.c.b16 %v882, %v880
      %v937 = vpack.c.b16 %v883, %v881
      %v938 = vpack.c.b16 %v886, %v884
      %v939 = vpack.c.b16 %v887, %v885
      %v940 = vpack.c.b16 %v890, %v888
      %v941 = vpack.c.b16 %v891, %v889
      %v942 = vpack.c.b16 %v894, %v892
      %v943 = vpack.c.b16 %v895, %v893
      %v944 = vpack.c.b16 %v898, %v896
      %v945 = vpack.c.b16 %v899, %v897
      %v946 = vpack.c.b16 %v902, %v900
      %v947 = vpack.c.b16 %v903, %v901
      %v948 = vpack.c.b16 %v906, %v904
      %v949 = vpack.c.b16 %v907, %v905
      %v950 = vpack.c.b16 %v910, %v908
      %v951 = vpack.c.b16 %v911, %v909
      %v952 = vpack.c.b16 %v914, %v912
      %v953 = vpack.c.b16 %v915, %v913
      %v954 = vpack.c.b16 %v918, %v916
      %v955 = vpack.c.b16 %v919, %v917
      %v956 = vpack.c.b16 %v922, %v920
      %v957 = vpack.c.b16 %v923, %v921
      %v958 = vpack.c.b16 %v926, %v924
      %v959 = vpack.c.b16 %v927, %v925
      %992 = vmatprep.subr.bf16.mxu0 %v929
      %993 = vmatpush1.bf16.msra.mxu0 %v928
      %994 = vmatprep.subr.bf16.mxu0 %v931
      %995 = vmatpush1.bf16.msra.mxu0 %v930
      %996 = vmatprep.subr.bf16.mxu0 %v933
      %997 = vmatpush1.bf16.msra.mxu0 %v932
      %998 = vmatprep.subr.bf16.mxu0 %v935
      %999 = vmatpush1.bf16.msra.mxu0 %v934
      %1000 = vmatprep.subr.bf16.mxu0 %v937
      %1001 = vmatpush1.bf16.msra.mxu0 %v936
      %1002 = vmatprep.subr.bf16.mxu0 %v939
      %1003 = vmatpush1.bf16.msra.mxu0 %v938
      %1004 = vmatprep.subr.bf16.mxu0 %v941
      %1005 = vmatpush1.bf16.msra.mxu0 %v940
      %1006 = vmatprep.subr.bf16.mxu0 %v943
      %1007 = vmatpush1.bf16.msra.mxu0 %v942
      %1008 = vmatprep.subr.bf16.mxu0 %v945
      %1009 = vmatpush1.bf16.msra.mxu0 %v944
      %1010 = vmatprep.subr.bf16.mxu0 %v947
      %1011 = vmatpush1.bf16.msra.mxu0 %v946
      %1012 = vmatprep.subr.bf16.mxu0 %v949
      %1013 = vmatpush1.bf16.msra.mxu0 %v948
      %1014 = vmatprep.subr.bf16.mxu0 %v951
      %1015 = vmatpush1.bf16.msra.mxu0 %v950
      %1016 = vmatprep.subr.bf16.mxu0 %v953
      %1017 = vmatpush1.bf16.msra.mxu0 %v952
      %1018 = vmatprep.subr.bf16.mxu0 %v955
      %1019 = vmatpush1.bf16.msra.mxu0 %v954
      %1020 = vmatprep.subr.bf16.mxu0 %v957
      %1021 = vmatpush1.bf16.msra.mxu0 %v956
      %1022 = vmatprep.subr.bf16.mxu0 %v959
      %1023 = vmatpush1.bf16.msra.mxu0 %v958
      %1024 = vmatprep.mubr.bf16.mxu0 %v532
      %1025 = vmatmul.mubr.bf16.gmra.mrb[0].mxu0 %v531
      %v1026 = vpop.f32.mrb[0].mxu0
      %v1027 = vadd.f32 %v824, %v1026
      %v1028 = vpop.f32.mrb[0].mxu0
      %v1029 = vadd.f32 %v826, %v1028
      %v1030 = vpop.f32.mrb[0].mxu0
      %v1031 = vadd.f32 %v828, %v1030
      %v1032 = vpop.f32.mrb[0].mxu0
      %v1033 = vadd.f32 %v830, %v1032
      %1034 = vdwg.mxu0
      %v1035 = vld [vmem:[%s516] sm:$0xfc]
      %v1036 = vld [vmem:[%s516 + $0x8] sm:$0xfc]
      %v1037 = vld [vmem:[%s516 + $0x20] sm:$0x3]
      %v1038 = vld [vmem:[%s516 + $0x28] sm:$0x3]
      %v1039 = vpack.c.bf16 %v525, %v1035
      %v1040 = vpack.c.bf16 %v526, %v1036
      %v1041 = vpack.c.bf16 %v1037, %v1037
      %v1042 = vpack.c.bf16 %v1038, %v1038
      %s1043 = scalar_lea.vmem %s1, 512
      %v1044 = vld [vmem:[%s1043] sm:$0xff]
      %v1045 = vld [vmem:[%s1043 + $0x8] sm:$0xff]
      %v1046 = vld [vmem:[%s1043 + $0x10] sm:$0xff]
      %v1047 = vld [vmem:[%s1043 + $0x18] sm:$0xff]
      %v1048 = vld [vmem:[%s1043 + $0x20] sm:$0xff]
      %v1049 = vld [vmem:[%s1043 + $0x28] sm:$0xff]
      %v1050 = vld [vmem:[%s1043 + $0x30] sm:$0xff]
      %v1051 = vld [vmem:[%s1043 + $0x38] sm:$0xff]
      %v1052 = vld [vmem:[%s1043 + $0x40] sm:$0xff]
      %v1053 = vld [vmem:[%s1043 + $0x48] sm:$0xff]
      %v1054 = vld [vmem:[%s1043 + $0x50] sm:$0xff]
      %v1055 = vld [vmem:[%s1043 + $0x58] sm:$0xff]
      %v1056 = vld [vmem:[%s1043 + $0x60] sm:$0xff]
      %v1057 = vld [vmem:[%s1043 + $0x68] sm:$0xff]
      %v1058 = vld [vmem:[%s1043 + $0x70] sm:$0xff]
      %v1059 = vld [vmem:[%s1043 + $0x78] sm:$0xff]
      %v1060 = vld [vmem:[%s1043 + $0x80] sm:$0xff]
      %v1061 = vld [vmem:[%s1043 + $0x88] sm:$0xff]
      %v1062 = vld [vmem:[%s1043 + $0x90] sm:$0xff]
      %v1063 = vld [vmem:[%s1043 + $0x98] sm:$0xff]
      %v1064 = vld [vmem:[%s1043 + $0xa0] sm:$0xff]
      %v1065 = vld [vmem:[%s1043 + $0xa8] sm:$0xff]
      %v1066 = vld [vmem:[%s1043 + $0xb0] sm:$0xff]
      %v1067 = vld [vmem:[%s1043 + $0xb8] sm:$0xff]
      %v1068 = vld [vmem:[%s1043 + $0xc0] sm:$0xff]
      %v1069 = vld [vmem:[%s1043 + $0xc8] sm:$0xff]
      %v1070 = vld [vmem:[%s1043 + $0xd0] sm:$0xff]
      %v1071 = vld [vmem:[%s1043 + $0xd8] sm:$0xff]
      %v1072 = vld [vmem:[%s1043 + $0xe0] sm:$0xff]
      %v1073 = vld [vmem:[%s1043 + $0xe8] sm:$0xff]
      %v1074 = vld [vmem:[%s1043 + $0xf0] sm:$0xff]
      %v1075 = vld [vmem:[%s1043 + $0xf8] sm:$0xff]
      %vm1080 = vcmask 1046528
      %v1081 = vrot.slane %v1039, 1
      %v1082 = vrot.slane %v1041, 1
      %v1083 = vsel %vm1080, %v1081, %v1082
      %v1084 = vrot.slane %v1040, 1
      %v1085 = vrot.slane %v1042, 1
      %v1086 = vsel %vm1080, %v1084, %v1085
      %v1121 = vunpack.c.l.b16 %v1044
      %v1122 = vunpack.c.h.b16 %v1044
      %v1123 = vunpack.c.l.b16 %v1045
      %v1124 = vunpack.c.h.b16 %v1045
      %v1125 = vunpack.c.l.b16 %v1046
      %v1126 = vunpack.c.h.b16 %v1046
      %v1127 = vunpack.c.l.b16 %v1047
      %v1128 = vunpack.c.h.b16 %v1047
      %v1129 = vunpack.c.l.b16 %v1048
      %v1130 = vunpack.c.h.b16 %v1048
      %v1131 = vunpack.c.l.b16 %v1049
      %v1132 = vunpack.c.h.b16 %v1049
      %v1133 = vunpack.c.l.b16 %v1050
      %v1134 = vunpack.c.h.b16 %v1050
      %v1135 = vunpack.c.l.b16 %v1051
      %v1136 = vunpack.c.h.b16 %v1051
      %v1137 = vunpack.c.l.b16 %v1052
      %v1138 = vunpack.c.h.b16 %v1052
      %v1139 = vunpack.c.l.b16 %v1053
      %v1140 = vunpack.c.h.b16 %v1053
      %v1141 = vunpack.c.l.b16 %v1054
      %v1142 = vunpack.c.h.b16 %v1054
      %v1143 = vunpack.c.l.b16 %v1055
      %v1144 = vunpack.c.h.b16 %v1055
      %v1145 = vunpack.c.l.b16 %v1056
      %v1146 = vunpack.c.h.b16 %v1056
      %v1147 = vunpack.c.l.b16 %v1057
      %v1148 = vunpack.c.h.b16 %v1057
      %v1149 = vunpack.c.l.b16 %v1058
      %v1150 = vunpack.c.h.b16 %v1058
      %v1151 = vunpack.c.l.b16 %v1059
      %v1152 = vunpack.c.h.b16 %v1059
      %v1153 = vunpack.c.l.b16 %v1060
      %v1154 = vunpack.c.h.b16 %v1060
      %v1155 = vunpack.c.l.b16 %v1061
      %v1156 = vunpack.c.h.b16 %v1061
      %v1157 = vunpack.c.l.b16 %v1062
      %v1158 = vunpack.c.h.b16 %v1062
      %v1159 = vunpack.c.l.b16 %v1063
      %v1160 = vunpack.c.h.b16 %v1063
      %v1161 = vunpack.c.l.b16 %v1064
      %v1162 = vunpack.c.h.b16 %v1064
      %v1163 = vunpack.c.l.b16 %v1065
      %v1164 = vunpack.c.h.b16 %v1065
      %v1165 = vunpack.c.l.b16 %v1066
      %v1166 = vunpack.c.h.b16 %v1066
      %v1167 = vunpack.c.l.b16 %v1067
      %v1168 = vunpack.c.h.b16 %v1067
      %v1169 = vunpack.c.l.b16 %v1068
      %v1170 = vunpack.c.h.b16 %v1068
      %v1171 = vunpack.c.l.b16 %v1069
      %v1172 = vunpack.c.h.b16 %v1069
      %v1173 = vunpack.c.l.b16 %v1070
      %v1174 = vunpack.c.h.b16 %v1070
      %v1175 = vunpack.c.l.b16 %v1071
      %v1176 = vunpack.c.h.b16 %v1071
      %v1177 = vunpack.c.l.b16 %v1072
      %v1178 = vunpack.c.h.b16 %v1072
      %v1179 = vunpack.c.l.b16 %v1073
      %v1180 = vunpack.c.h.b16 %v1073
      %v1181 = vunpack.c.l.b16 %v1074
      %v1182 = vunpack.c.h.b16 %v1074
      %v1183 = vunpack.c.l.b16 %v1075
      %v1184 = vunpack.c.h.b16 %v1075
      %v1185 = vpack.c.b16 %v1123, %v1121
      %v1186 = vpack.c.b16 %v1124, %v1122
      %v1187 = vpack.c.b16 %v1127, %v1125
      %v1188 = vpack.c.b16 %v1128, %v1126
      %v1189 = vpack.c.b16 %v1131, %v1129
      %v1190 = vpack.c.b16 %v1132, %v1130
      %v1191 = vpack.c.b16 %v1135, %v1133
      %v1192 = vpack.c.b16 %v1136, %v1134
      %v1193 = vpack.c.b16 %v1139, %v1137
      %v1194 = vpack.c.b16 %v1140, %v1138
      %v1195 = vpack.c.b16 %v1143, %v1141
      %v1196 = vpack.c.b16 %v1144, %v1142
      %v1197 = vpack.c.b16 %v1147, %v1145
      %v1198 = vpack.c.b16 %v1148, %v1146
      %v1199 = vpack.c.b16 %v1151, %v1149
      %v1200 = vpack.c.b16 %v1152, %v1150
      %v1201 = vpack.c.b16 %v1155, %v1153
      %v1202 = vpack.c.b16 %v1156, %v1154
      %v1203 = vpack.c.b16 %v1159, %v1157
      %v1204 = vpack.c.b16 %v1160, %v1158
      %v1205 = vpack.c.b16 %v1163, %v1161
      %v1206 = vpack.c.b16 %v1164, %v1162
      %v1207 = vpack.c.b16 %v1167, %v1165
      %v1208 = vpack.c.b16 %v1168, %v1166
      %v1209 = vpack.c.b16 %v1171, %v1169
      %v1210 = vpack.c.b16 %v1172, %v1170
      %v1211 = vpack.c.b16 %v1175, %v1173
      %v1212 = vpack.c.b16 %v1176, %v1174
      %v1213 = vpack.c.b16 %v1179, %v1177
      %v1214 = vpack.c.b16 %v1180, %v1178
      %v1215 = vpack.c.b16 %v1183, %v1181
      %v1216 = vpack.c.b16 %v1184, %v1182
      %1249 = vmatprep.subr.bf16.mxu0 %v1186
      %1250 = vmatpush1.bf16.msra.mxu0 %v1185
      %1251 = vmatprep.subr.bf16.mxu0 %v1188
      %1252 = vmatpush1.bf16.msra.mxu0 %v1187
      %1253 = vmatprep.subr.bf16.mxu0 %v1190
      %1254 = vmatpush1.bf16.msra.mxu0 %v1189
      %1255 = vmatprep.subr.bf16.mxu0 %v1192
      %1256 = vmatpush1.bf16.msra.mxu0 %v1191
      %1257 = vmatprep.subr.bf16.mxu0 %v1194
      %1258 = vmatpush1.bf16.msra.mxu0 %v1193
      %1259 = vmatprep.subr.bf16.mxu0 %v1196
      %1260 = vmatpush1.bf16.msra.mxu0 %v1195
      %1261 = vmatprep.subr.bf16.mxu0 %v1198
      %1262 = vmatpush1.bf16.msra.mxu0 %v1197
      %1263 = vmatprep.subr.bf16.mxu0 %v1200
      %1264 = vmatpush1.bf16.msra.mxu0 %v1199
      %1265 = vmatprep.subr.bf16.mxu0 %v1202
      %1266 = vmatpush1.bf16.msra.mxu0 %v1201
      %1267 = vmatprep.subr.bf16.mxu0 %v1204
      %1268 = vmatpush1.bf16.msra.mxu0 %v1203
      %1269 = vmatprep.subr.bf16.mxu0 %v1206
      %1270 = vmatpush1.bf16.msra.mxu0 %v1205
      %1271 = vmatprep.subr.bf16.mxu0 %v1208
      %1272 = vmatpush1.bf16.msra.mxu0 %v1207
      %1273 = vmatprep.subr.bf16.mxu0 %v1210
      %1274 = vmatpush1.bf16.msra.mxu0 %v1209
      %1275 = vmatprep.subr.bf16.mxu0 %v1212
      %1276 = vmatpush1.bf16.msra.mxu0 %v1211
      %1277 = vmatprep.subr.bf16.mxu0 %v1214
      %1278 = vmatpush1.bf16.msra.mxu0 %v1213
      %1279 = vmatprep.subr.bf16.mxu0 %v1216
      %1280 = vmatpush1.bf16.msra.mxu0 %v1215
      %1281 = vmatprep.mubr.bf16.mxu0 %v1086
      %1282 = vmatmul.mubr.bf16.gmra.mrb[0].mxu0 %v1083
      %v1283 = vpop.f32.mrb[0].mxu0
      %v1284 = vadd.f32 0.0, %v1283
      %v1285 = vpop.f32.mrb[0].mxu0
      %v1286 = vadd.f32 0.0, %v1285
      %v1287 = vpop.f32.mrb[0].mxu0
      %v1288 = vadd.f32 0.0, %v1287
      %v1289 = vpop.f32.mrb[0].mxu0
      %v1290 = vadd.f32 0.0, %v1289
      %1291 = vdwg.mxu0
      %v1292 = vadd.f32 %v1027, %v1284
      %v1293 = vadd.f32 %v1029, %v1286
      %v1294 = vadd.f32 %v1031, %v1288
      %v1295 = vadd.f32 %v1033, %v1290
      %v1296 = vld [vmem:[%s2] sm:$0x3]
      %v1298 = vlaneseq
      %v1299 = vshrl.u32 %v1298, 7
      %v1300 = vsub.s32 0, %v1299
      %v1301 = vrot.slane %v1296, %v1300
      %v1302 = vlaneseq
      %v1303 = vshrl.u32 %v1302, 7
      %v1304 = vsub.s32 1, %v1303
      %v1305 = vrot.slane %v1296, %v1304
      %v1308 = vadd.f32 %v1292, %v1301
      %v1309 = vadd.f32 %v1293, %v1305
      %v1310 = vadd.f32 %v1294, %v1301
      %v1311 = vadd.f32 %v1295, %v1305
      %v1312 = vmax.f32 %v1308, 0.0
      %v1313 = vmax.f32 %v1309, 0.0
      %v1314 = vmax.f32 %v1310, 0.0
      %v1315 = vmax.f32 %v1311, 0.0
      %vm1322 = vcmask 1046528
      %v1323 = vrot.slane %v523, 1
      %v1324 = vrot.slane %v525, 1
      %v1325 = vsel %vm1322, %v1323, %v1324
      %v1326 = vrot.slane %v524, 1
      %v1327 = vrot.slane %v526, 1
      %v1328 = vsel %vm1322, %v1326, %v1327
      %v1329 = vrot.slane %v527, 1
      %v1330 = vsel %vm1322, %v1324, %v1329
      %v1331 = vrot.slane %v528, 1
      %v1332 = vsel %vm1322, %v1327, %v1331
      %v1337 = vadd.f32 %v1312, %v1325
      %v1338 = vadd.f32 %v1313, %v1328
      %v1339 = vadd.f32 %v1314, %v1330
      %v1340 = vadd.f32 %v1315, %v1332
      %v1341 = vlaneseq
      %vm1342 = vcmp.ge.s32.totalorder %v1341, 0
      %vm1343 = vcmp.lt.s32.totalorder %v1341, 256
      %vm1344 = vmand %vm1342, %vm1343
      %1345 = vst.msk [vmem:[#allocation2] ss:$8 sm:$0x3] %vm1344, 0.0
      %1346 = vst.msk [vmem:[#allocation2] ss:$8 sm:$0x0] %vm1344, 0.0
      %s1347 = scalar_lea.vmem [#allocation2], 33
      %1348 = vst.msk [vmem:[%s1347] ss:$8 sm:$0x3] %vm1344, 0.0
      %1349 = vst.msk [vmem:[%s1347] ss:$8 sm:$0x0] %vm1344, 0.0
      %vm1354 = vcmask 1040384
      %v1355 = vrot.slane %v1337, 7
      %v1356 = vrot.slane %v1338, 7
      %v1357 = vrot.slane %v1339, 7
      %v1358 = vsel %vm1354, %v1355, %v1357
      %v1359 = vrot.slane %v1340, 7
      %v1360 = vsel %vm1354, %v1356, %v1359
      %1367 = vst [vmem:[#allocation2] sm:$0xfe] %v1355
      %1368 = vst [vmem:[#allocation2 + $0x8] sm:$0xfe] %v1356
      %1369 = vst [vmem:[#allocation2 + $0x10] sm:$0xff] %v1358
      %1370 = vst [vmem:[#allocation2 + $0x18] sm:$0xff] %v1360
      %1371 = vst [vmem:[#allocation2 + $0x20] sm:$0x1] %v1357
      %1372 = vst [vmem:[#allocation2 + $0x28] sm:$0x1] %v1359
      %v1373 = vld [vmem:[#allocation2] sm:$0xff]
      %v1374 = vld [vmem:[#allocation2 + $0x8] sm:$0xff]
      %v1375 = vld [vmem:[#allocation2 + $0x10] sm:$0xff]
      %v1376 = vld [vmem:[#allocation2 + $0x18] sm:$0xff]
      %v1377 = vpack.c.bf16 %v1375, %v1373
      %v1378 = vpack.c.bf16 %v1376, %v1374
      %v1379 = vld [vmem:[%s3] sm:$0xff]
      %v1380 = vld [vmem:[%s3 + $0x8] sm:$0xff]
      %v1381 = vld [vmem:[%s3 + $0x10] sm:$0xff]
      %v1382 = vld [vmem:[%s3 + $0x18] sm:$0xff]
      %v1383 = vld [vmem:[%s3 + $0x20] sm:$0xff]
      %v1384 = vld [vmem:[%s3 + $0x28] sm:$0xff]
      %v1385 = vld [vmem:[%s3 + $0x30] sm:$0xff]
      %v1386 = vld [vmem:[%s3 + $0x38] sm:$0xff]
      %v1387 = vld [vmem:[%s3 + $0x40] sm:$0xff]
      %v1388 = vld [vmem:[%s3 + $0x48] sm:$0xff]
      %v1389 = vld [vmem:[%s3 + $0x50] sm:$0xff]
      %v1390 = vld [vmem:[%s3 + $0x58] sm:$0xff]
      %v1391 = vld [vmem:[%s3 + $0x60] sm:$0xff]
      %v1392 = vld [vmem:[%s3 + $0x68] sm:$0xff]
      %v1393 = vld [vmem:[%s3 + $0x70] sm:$0xff]
      %v1394 = vld [vmem:[%s3 + $0x78] sm:$0xff]
      %v1395 = vld [vmem:[%s3 + $0x80] sm:$0xff]
      %v1396 = vld [vmem:[%s3 + $0x88] sm:$0xff]
      %v1397 = vld [vmem:[%s3 + $0x90] sm:$0xff]
      %v1398 = vld [vmem:[%s3 + $0x98] sm:$0xff]
      %v1399 = vld [vmem:[%s3 + $0xa0] sm:$0xff]
      %v1400 = vld [vmem:[%s3 + $0xa8] sm:$0xff]
      %v1401 = vld [vmem:[%s3 + $0xb0] sm:$0xff]
      %v1402 = vld [vmem:[%s3 + $0xb8] sm:$0xff]
      %v1403 = vld [vmem:[%s3 + $0xc0] sm:$0xff]
      %v1404 = vld [vmem:[%s3 + $0xc8] sm:$0xff]
      %v1405 = vld [vmem:[%s3 + $0xd0] sm:$0xff]
      %v1406 = vld [vmem:[%s3 + $0xd8] sm:$0xff]
      %v1407 = vld [vmem:[%s3 + $0xe0] sm:$0xff]
      %v1408 = vld [vmem:[%s3 + $0xe8] sm:$0xff]
      %v1409 = vld [vmem:[%s3 + $0xf0] sm:$0xff]
      %v1410 = vld [vmem:[%s3 + $0xf8] sm:$0xff]
      %v1411 = vld [vmem:[#allocation2] sm:$0xfe]
      %v1412 = vld [vmem:[#allocation2 + $0x8] sm:$0xfe]
      %v1413 = vld [vmem:[#allocation2 + $0x20] sm:$0x1]
      %v1414 = vld [vmem:[#allocation2 + $0x28] sm:$0x1]
      %v1415 = vpack.c.bf16 %v1375, %v1411
      %v1416 = vpack.c.bf16 %v1376, %v1412
      %v1417 = vpack.c.bf16 %v1413, %v1413
      %v1418 = vpack.c.bf16 %v1414, %v1414
      %s1419 = scalar_lea.vmem %s3, 256
      %v1420 = vld [vmem:[%s1419] sm:$0xff]
      %v1421 = vld [vmem:[%s1419 + $0x8] sm:$0xff]
      %v1422 = vld [vmem:[%s1419 + $0x10] sm:$0xff]
      %v1423 = vld [vmem:[%s1419 + $0x18] sm:$0xff]
      %v1424 = vld [vmem:[%s1419 + $0x20] sm:$0xff]
      %v1425 = vld [vmem:[%s1419 + $0x28] sm:$0xff]
      %v1426 = vld [vmem:[%s1419 + $0x30] sm:$0xff]
      %v1427 = vld [vmem:[%s1419 + $0x38] sm:$0xff]
      %v1428 = vld [vmem:[%s1419 + $0x40] sm:$0xff]
      %v1429 = vld [vmem:[%s1419 + $0x48] sm:$0xff]
      %v1430 = vld [vmem:[%s1419 + $0x50] sm:$0xff]
      %v1431 = vld [vmem:[%s1419 + $0x58] sm:$0xff]
      %v1432 = vld [vmem:[%s1419 + $0x60] sm:$0xff]
      %v1433 = vld [vmem:[%s1419 + $0x68] sm:$0xff]
      %v1434 = vld [vmem:[%s1419 + $0x70] sm:$0xff]
      %v1435 = vld [vmem:[%s1419 + $0x78] sm:$0xff]
      %v1436 = vld [vmem:[%s1419 + $0x80] sm:$0xff]
      %v1437 = vld [vmem:[%s1419 + $0x88] sm:$0xff]
      %v1438 = vld [vmem:[%s1419 + $0x90] sm:$0xff]
      %v1439 = vld [vmem:[%s1419 + $0x98] sm:$0xff]
      %v1440 = vld [vmem:[%s1419 + $0xa0] sm:$0xff]
      %v1441 = vld [vmem:[%s1419 + $0xa8] sm:$0xff]
      %v1442 = vld [vmem:[%s1419 + $0xb0] sm:$0xff]
      %v1443 = vld [vmem:[%s1419 + $0xb8] sm:$0xff]
      %v1444 = vld [vmem:[%s1419 + $0xc0] sm:$0xff]
      %v1445 = vld [vmem:[%s1419 + $0xc8] sm:$0xff]
      %v1446 = vld [vmem:[%s1419 + $0xd0] sm:$0xff]
      %v1447 = vld [vmem:[%s1419 + $0xd8] sm:$0xff]
      %v1448 = vld [vmem:[%s1419 + $0xe0] sm:$0xff]
      %v1449 = vld [vmem:[%s1419 + $0xe8] sm:$0xff]
      %v1450 = vld [vmem:[%s1419 + $0xf0] sm:$0xff]
      %v1451 = vld [vmem:[%s1419 + $0xf8] sm:$0xff]
      %v1453 = vshrl.u32 %v1415, 16
      %v1455 = vshll.u32 %v1415, 16
      %v1457 = vrot.slane %v1455, 1
      %v1458 = vor.u32 %v1453, %v1457
      %v1460 = vshll.u32 %v1417, 16
      %v1462 = vrot.slane %v1460, 1
      %v1463 = vsel %vm602, %v1458, %v1462
      %v1465 = vshrl.u32 %v1416, 16
      %v1467 = vshll.u32 %v1416, 16
      %v1469 = vrot.slane %v1467, 1
      %v1470 = vor.u32 %v1465, %v1469
      %v1472 = vshll.u32 %v1418, 16
      %v1474 = vrot.slane %v1472, 1
      %v1475 = vsel %vm602, %v1470, %v1474
      %v1510 = vunpack.c.l.b16 %v1420
      %v1511 = vunpack.c.h.b16 %v1420
      %v1512 = vunpack.c.l.b16 %v1421
      %v1513 = vunpack.c.h.b16 %v1421
      %v1514 = vunpack.c.l.b16 %v1422
      %v1515 = vunpack.c.h.b16 %v1422
      %v1516 = vunpack.c.l.b16 %v1423
      %v1517 = vunpack.c.h.b16 %v1423
      %v1518 = vunpack.c.l.b16 %v1424
      %v1519 = vunpack.c.h.b16 %v1424
      %v1520 = vunpack.c.l.b16 %v1425
      %v1521 = vunpack.c.h.b16 %v1425
      %v1522 = vunpack.c.l.b16 %v1426
      %v1523 = vunpack.c.h.b16 %v1426
      %v1524 = vunpack.c.l.b16 %v1427
      %v1525 = vunpack.c.h.b16 %v1427
      %v1526 = vunpack.c.l.b16 %v1428
      %v1527 = vunpack.c.h.b16 %v1428
      %v1528 = vunpack.c.l.b16 %v1429
      %v1529 = vunpack.c.h.b16 %v1429
      %v1530 = vunpack.c.l.b16 %v1430
      %v1531 = vunpack.c.h.b16 %v1430
      %v1532 = vunpack.c.l.b16 %v1431
      %v1533 = vunpack.c.h.b16 %v1431
      %v1534 = vunpack.c.l.b16 %v1432
      %v1535 = vunpack.c.h.b16 %v1432
      %v1536 = vunpack.c.l.b16 %v1433
      %v1537 = vunpack.c.h.b16 %v1433
      %v1538 = vunpack.c.l.b16 %v1434
      %v1539 = vunpack.c.h.b16 %v1434
      %v1540 = vunpack.c.l.b16 %v1435
      %v1541 = vunpack.c.h.b16 %v1435
      %v1542 = vunpack.c.l.b16 %v1436
      %v1543 = vunpack.c.h.b16 %v1436
      %v1544 = vunpack.c.l.b16 %v1437
      %v1545 = vunpack.c.h.b16 %v1437
      %v1546 = vunpack.c.l.b16 %v1438
      %v1547 = vunpack.c.h.b16 %v1438
      %v1548 = vunpack.c.l.b16 %v1439
      %v1549 = vunpack.c.h.b16 %v1439
      %v1550 = vunpack.c.l.b16 %v1440
      %v1551 = vunpack.c.h.b16 %v1440
      %v1552 = vunpack.c.l.b16 %v1441
      %v1553 = vunpack.c.h.b16 %v1441
      %v1554 = vunpack.c.l.b16 %v1442
      %v1555 = vunpack.c.h.b16 %v1442
      %v1556 = vunpack.c.l.b16 %v1443
      %v1557 = vunpack.c.h.b16 %v1443
      %v1558 = vunpack.c.l.b16 %v1444
      %v1559 = vunpack.c.h.b16 %v1444
      %v1560 = vunpack.c.l.b16 %v1445
      %v1561 = vunpack.c.h.b16 %v1445
      %v1562 = vunpack.c.l.b16 %v1446
      %v1563 = vunpack.c.h.b16 %v1446
      %v1564 = vunpack.c.l.b16 %v1447
      %v1565 = vunpack.c.h.b16 %v1447
      %v1566 = vunpack.c.l.b16 %v1448
      %v1567 = vunpack.c.h.b16 %v1448
      %v1568 = vunpack.c.l.b16 %v1449
      %v1569 = vunpack.c.h.b16 %v1449
      %v1570 = vunpack.c.l.b16 %v1450
      %v1571 = vunpack.c.h.b16 %v1450
      %v1572 = vunpack.c.l.b16 %v1451
      %v1573 = vunpack.c.h.b16 %v1451
      %v1574 = vpack.c.b16 %v1512, %v1510
      %v1575 = vpack.c.b16 %v1513, %v1511
      %v1576 = vpack.c.b16 %v1516, %v1514
      %v1577 = vpack.c.b16 %v1517, %v1515
      %v1578 = vpack.c.b16 %v1520, %v1518
      %v1579 = vpack.c.b16 %v1521, %v1519
      %v1580 = vpack.c.b16 %v1524, %v1522
      %v1581 = vpack.c.b16 %v1525, %v1523
      %v1582 = vpack.c.b16 %v1528, %v1526
      %v1583 = vpack.c.b16 %v1529, %v1527
      %v1584 = vpack.c.b16 %v1532, %v1530
      %v1585 = vpack.c.b16 %v1533, %v1531
      %v1586 = vpack.c.b16 %v1536, %v1534
      %v1587 = vpack.c.b16 %v1537, %v1535
      %v1588 = vpack.c.b16 %v1540, %v1538
      %v1589 = vpack.c.b16 %v1541, %v1539
      %v1590 = vpack.c.b16 %v1544, %v1542
      %v1591 = vpack.c.b16 %v1545, %v1543
      %v1592 = vpack.c.b16 %v1548, %v1546
      %v1593 = vpack.c.b16 %v1549, %v1547
      %v1594 = vpack.c.b16 %v1552, %v1550
      %v1595 = vpack.c.b16 %v1553, %v1551
      %v1596 = vpack.c.b16 %v1556, %v1554
      %v1597 = vpack.c.b16 %v1557, %v1555
      %v1598 = vpack.c.b16 %v1560, %v1558
      %v1599 = vpack.c.b16 %v1561, %v1559
      %v1600 = vpack.c.b16 %v1564, %v1562
      %v1601 = vpack.c.b16 %v1565, %v1563
      %v1602 = vpack.c.b16 %v1568, %v1566
      %v1603 = vpack.c.b16 %v1569, %v1567
      %v1604 = vpack.c.b16 %v1572, %v1570
      %v1605 = vpack.c.b16 %v1573, %v1571
      %1638 = vmatprep.subr.bf16.mxu0 %v1575
      %1639 = vmatpush1.bf16.msra.mxu0 %v1574
      %1640 = vmatprep.subr.bf16.mxu0 %v1577
      %1641 = vmatpush1.bf16.msra.mxu0 %v1576
      %1642 = vmatprep.subr.bf16.mxu0 %v1579
      %1643 = vmatpush1.bf16.msra.mxu0 %v1578
      %1644 = vmatprep.subr.bf16.mxu0 %v1581
      %1645 = vmatpush1.bf16.msra.mxu0 %v1580
      %1646 = vmatprep.subr.bf16.mxu0 %v1583
      %1647 = vmatpush1.bf16.msra.mxu0 %v1582
      %1648 = vmatprep.subr.bf16.mxu0 %v1585
      %1649 = vmatpush1.bf16.msra.mxu0 %v1584
      %1650 = vmatprep.subr.bf16.mxu0 %v1587
      %1651 = vmatpush1.bf16.msra.mxu0 %v1586
      %1652 = vmatprep.subr.bf16.mxu0 %v1589
      %1653 = vmatpush1.bf16.msra.mxu0 %v1588
      %1654 = vmatprep.subr.bf16.mxu0 %v1591
      %1655 = vmatpush1.bf16.msra.mxu0 %v1590
      %1656 = vmatprep.subr.bf16.mxu0 %v1593
      %1657 = vmatpush1.bf16.msra.mxu0 %v1592
      %1658 = vmatprep.subr.bf16.mxu0 %v1595
      %1659 = vmatpush1.bf16.msra.mxu0 %v1594
      %1660 = vmatprep.subr.bf16.mxu0 %v1597
      %1661 = vmatpush1.bf16.msra.mxu0 %v1596
      %1662 = vmatprep.subr.bf16.mxu0 %v1599
      %1663 = vmatpush1.bf16.msra.mxu0 %v1598
      %1664 = vmatprep.subr.bf16.mxu0 %v1601
      %1665 = vmatpush1.bf16.msra.mxu0 %v1600
      %1666 = vmatprep.subr.bf16.mxu0 %v1603
      %1667 = vmatpush1.bf16.msra.mxu0 %v1602
      %1668 = vmatprep.subr.bf16.mxu0 %v1605
      %1669 = vmatpush1.bf16.msra.mxu0 %v1604
      %1670 = vmatprep.mubr.bf16.mxu0 %v1475
      %1671 = vmatmul.mubr.bf16.gmra.mrb[0].mxu0 %v1463
      %v1672 = vpop.f32.mrb[0].mxu0
      %v1673 = vadd.f32 0.0, %v1672
      %v1674 = vpop.f32.mrb[0].mxu0
      %v1675 = vadd.f32 0.0, %v1674
      %v1676 = vpop.f32.mrb[0].mxu0
      %v1677 = vadd.f32 0.0, %v1676
      %v1678 = vpop.f32.mrb[0].mxu0
      %v1679 = vadd.f32 0.0, %v1678
      %1680 = vdwg.mxu0
      %v1713 = vunpack.c.l.b16 %v1379
      %v1714 = vunpack.c.h.b16 %v1379
      %v1715 = vunpack.c.l.b16 %v1380
      %v1716 = vunpack.c.h.b16 %v1380
      %v1717 = vunpack.c.l.b16 %v1381
      %v1718 = vunpack.c.h.b16 %v1381
      %v1719 = vunpack.c.l.b16 %v1382
      %v1720 = vunpack.c.h.b16 %v1382
      %v1721 = vunpack.c.l.b16 %v1383
      %v1722 = vunpack.c.h.b16 %v1383
      %v1723 = vunpack.c.l.b16 %v1384
      %v1724 = vunpack.c.h.b16 %v1384
      %v1725 = vunpack.c.l.b16 %v1385
      %v1726 = vunpack.c.h.b16 %v1385
      %v1727 = vunpack.c.l.b16 %v1386
      %v1728 = vunpack.c.h.b16 %v1386
      %v1729 = vunpack.c.l.b16 %v1387
      %v1730 = vunpack.c.h.b16 %v1387
      %v1731 = vunpack.c.l.b16 %v1388
      %v1732 = vunpack.c.h.b16 %v1388
      %v1733 = vunpack.c.l.b16 %v1389
      %v1734 = vunpack.c.h.b16 %v1389
      %v1735 = vunpack.c.l.b16 %v1390
      %v1736 = vunpack.c.h.b16 %v1390
      %v1737 = vunpack.c.l.b16 %v1391
      %v1738 = vunpack.c.h.b16 %v1391
      %v1739 = vunpack.c.l.b16 %v1392
      %v1740 = vunpack.c.h.b16 %v1392
      %v1741 = vunpack.c.l.b16 %v1393
      %v1742 = vunpack.c.h.b16 %v1393
      %v1743 = vunpack.c.l.b16 %v1394
      %v1744 = vunpack.c.h.b16 %v1394
      %v1745 = vunpack.c.l.b16 %v1395
      %v1746 = vunpack.c.h.b16 %v1395
      %v1747 = vunpack.c.l.b16 %v1396
      %v1748 = vunpack.c.h.b16 %v1396
      %v1749 = vunpack.c.l.b16 %v1397
      %v1750 = vunpack.c.h.b16 %v1397
      %v1751 = vunpack.c.l.b16 %v1398
      %v1752 = vunpack.c.h.b16 %v1398
      %v1753 = vunpack.c.l.b16 %v1399
      %v1754 = vunpack.c.h.b16 %v1399
      %v1755 = vunpack.c.l.b16 %v1400
      %v1756 = vunpack.c.h.b16 %v1400
      %v1757 = vunpack.c.l.b16 %v1401
      %v1758 = vunpack.c.h.b16 %v1401
      %v1759 = vunpack.c.l.b16 %v1402
      %v1760 = vunpack.c.h.b16 %v1402
      %v1761 = vunpack.c.l.b16 %v1403
      %v1762 = vunpack.c.h.b16 %v1403
      %v1763 = vunpack.c.l.b16 %v1404
      %v1764 = vunpack.c.h.b16 %v1404
      %v1765 = vunpack.c.l.b16 %v1405
      %v1766 = vunpack.c.h.b16 %v1405
      %v1767 = vunpack.c.l.b16 %v1406
      %v1768 = vunpack.c.h.b16 %v1406
      %v1769 = vunpack.c.l.b16 %v1407
      %v1770 = vunpack.c.h.b16 %v1407
      %v1771 = vunpack.c.l.b16 %v1408
      %v1772 = vunpack.c.h.b16 %v1408
      %v1773 = vunpack.c.l.b16 %v1409
      %v1774 = vunpack.c.h.b16 %v1409
      %v1775 = vunpack.c.l.b16 %v1410
      %v1776 = vunpack.c.h.b16 %v1410
      %v1777 = vpack.c.b16 %v1715, %v1713
      %v1778 = vpack.c.b16 %v1716, %v1714
      %v1779 = vpack.c.b16 %v1719, %v1717
      %v1780 = vpack.c.b16 %v1720, %v1718
      %v1781 = vpack.c.b16 %v1723, %v1721
      %v1782 = vpack.c.b16 %v1724, %v1722
      %v1783 = vpack.c.b16 %v1727, %v1725
      %v1784 = vpack.c.b16 %v1728, %v1726
      %v1785 = vpack.c.b16 %v1731, %v1729
      %v1786 = vpack.c.b16 %v1732, %v1730
      %v1787 = vpack.c.b16 %v1735, %v1733
      %v1788 = vpack.c.b16 %v1736, %v1734
      %v1789 = vpack.c.b16 %v1739, %v1737
      %v1790 = vpack.c.b16 %v1740, %v1738
      %v1791 = vpack.c.b16 %v1743, %v1741
      %v1792 = vpack.c.b16 %v1744, %v1742
      %v1793 = vpack.c.b16 %v1747, %v1745
      %v1794 = vpack.c.b16 %v1748, %v1746
      %v1795 = vpack.c.b16 %v1751, %v1749
      %v1796 = vpack.c.b16 %v1752, %v1750
      %v1797 = vpack.c.b16 %v1755, %v1753
      %v1798 = vpack.c.b16 %v1756, %v1754
      %v1799 = vpack.c.b16 %v1759, %v1757
      %v1800 = vpack.c.b16 %v1760, %v1758
      %v1801 = vpack.c.b16 %v1763, %v1761
      %v1802 = vpack.c.b16 %v1764, %v1762
      %v1803 = vpack.c.b16 %v1767, %v1765
      %v1804 = vpack.c.b16 %v1768, %v1766
      %v1805 = vpack.c.b16 %v1771, %v1769
      %v1806 = vpack.c.b16 %v1772, %v1770
      %v1807 = vpack.c.b16 %v1775, %v1773
      %v1808 = vpack.c.b16 %v1776, %v1774
      %1841 = vmatprep.subr.bf16.mxu0 %v1778
      %1842 = vmatpush1.bf16.msra.mxu0 %v1777
      %1843 = vmatprep.subr.bf16.mxu0 %v1780
      %1844 = vmatpush1.bf16.msra.mxu0 %v1779
      %1845 = vmatprep.subr.bf16.mxu0 %v1782
      %1846 = vmatpush1.bf16.msra.mxu0 %v1781
      %1847 = vmatprep.subr.bf16.mxu0 %v1784
      %1848 = vmatpush1.bf16.msra.mxu0 %v1783
      %1849 = vmatprep.subr.bf16.mxu0 %v1786
      %1850 = vmatpush1.bf16.msra.mxu0 %v1785
      %1851 = vmatprep.subr.bf16.mxu0 %v1788
      %1852 = vmatpush1.bf16.msra.mxu0 %v1787
      %1853 = vmatprep.subr.bf16.mxu0 %v1790
      %1854 = vmatpush1.bf16.msra.mxu0 %v1789
      %1855 = vmatprep.subr.bf16.mxu0 %v1792
      %1856 = vmatpush1.bf16.msra.mxu0 %v1791
      %1857 = vmatprep.subr.bf16.mxu0 %v1794
      %1858 = vmatpush1.bf16.msra.mxu0 %v1793
      %1859 = vmatprep.subr.bf16.mxu0 %v1796
      %1860 = vmatpush1.bf16.msra.mxu0 %v1795
      %1861 = vmatprep.subr.bf16.mxu0 %v1798
      %1862 = vmatpush1.bf16.msra.mxu0 %v1797
      %1863 = vmatprep.subr.bf16.mxu0 %v1800
      %1864 = vmatpush1.bf16.msra.mxu0 %v1799
      %1865 = vmatprep.subr.bf16.mxu0 %v1802
      %1866 = vmatpush1.bf16.msra.mxu0 %v1801
      %1867 = vmatprep.subr.bf16.mxu0 %v1804
      %1868 = vmatpush1.bf16.msra.mxu0 %v1803
      %1869 = vmatprep.subr.bf16.mxu0 %v1806
      %1870 = vmatpush1.bf16.msra.mxu0 %v1805
      %1871 = vmatprep.subr.bf16.mxu0 %v1808
      %1872 = vmatpush1.bf16.msra.mxu0 %v1807
      %1873 = vmatprep.mubr.bf16.mxu0 %v1378
      %1874 = vmatmul.mubr.bf16.gmra.mrb[0].mxu0 %v1377
      %v1875 = vpop.f32.mrb[0].mxu0
      %v1876 = vadd.f32 %v1673, %v1875
      %v1877 = vpop.f32.mrb[0].mxu0
      %v1878 = vadd.f32 %v1675, %v1877
      %v1879 = vpop.f32.mrb[0].mxu0
      %v1880 = vadd.f32 %v1677, %v1879
      %v1881 = vpop.f32.mrb[0].mxu0
      %v1882 = vadd.f32 %v1679, %v1881
      %1883 = vdwg.mxu0
      %v1884 = vld [vmem:[#allocation2] sm:$0xfc]
      %v1885 = vld [vmem:[#allocation2 + $0x8] sm:$0xfc]
      %v1886 = vld [vmem:[#allocation2 + $0x20] sm:$0x3]
      %v1887 = vld [vmem:[#allocation2 + $0x28] sm:$0x3]
      %v1888 = vpack.c.bf16 %v1375, %v1884
      %v1889 = vpack.c.bf16 %v1376, %v1885
      %v1890 = vpack.c.bf16 %v1886, %v1886
      %v1891 = vpack.c.bf16 %v1887, %v1887
      %s1892 = scalar_lea.vmem %s3, 512
      %v1893 = vld [vmem:[%s1892] sm:$0xff]
      %v1894 = vld [vmem:[%s1892 + $0x8] sm:$0xff]
      %v1895 = vld [vmem:[%s1892 + $0x10] sm:$0xff]
      %v1896 = vld [vmem:[%s1892 + $0x18] sm:$0xff]
      %v1897 = vld [vmem:[%s1892 + $0x20] sm:$0xff]
      %v1898 = vld [vmem:[%s1892 + $0x28] sm:$0xff]
      %v1899 = vld [vmem:[%s1892 + $0x30] sm:$0xff]
      %v1900 = vld [vmem:[%s1892 + $0x38] sm:$0xff]
      %v1901 = vld [vmem:[%s1892 + $0x40] sm:$0xff]
      %v1902 = vld [vmem:[%s1892 + $0x48] sm:$0xff]
      %v1903 = vld [vmem:[%s1892 + $0x50] sm:$0xff]
      %v1904 = vld [vmem:[%s1892 + $0x58] sm:$0xff]
      %v1905 = vld [vmem:[%s1892 + $0x60] sm:$0xff]
      %v1906 = vld [vmem:[%s1892 + $0x68] sm:$0xff]
      %v1907 = vld [vmem:[%s1892 + $0x70] sm:$0xff]
      %v1908 = vld [vmem:[%s1892 + $0x78] sm:$0xff]
      %v1909 = vld [vmem:[%s1892 + $0x80] sm:$0xff]
      %v1910 = vld [vmem:[%s1892 + $0x88] sm:$0xff]
      %v1911 = vld [vmem:[%s1892 + $0x90] sm:$0xff]
      %v1912 = vld [vmem:[%s1892 + $0x98] sm:$0xff]
      %v1913 = vld [vmem:[%s1892 + $0xa0] sm:$0xff]
      %v1914 = vld [vmem:[%s1892 + $0xa8] sm:$0xff]
      %v1915 = vld [vmem:[%s1892 + $0xb0] sm:$0xff]
      %v1916 = vld [vmem:[%s1892 + $0xb8] sm:$0xff]
      %v1917 = vld [vmem:[%s1892 + $0xc0] sm:$0xff]
      %v1918 = vld [vmem:[%s1892 + $0xc8] sm:$0xff]
      %v1919 = vld [vmem:[%s1892 + $0xd0] sm:$0xff]
      %v1920 = vld [vmem:[%s1892 + $0xd8] sm:$0xff]
      %v1921 = vld [vmem:[%s1892 + $0xe0] sm:$0xff]
      %v1922 = vld [vmem:[%s1892 + $0xe8] sm:$0xff]
      %v1923 = vld [vmem:[%s1892 + $0xf0] sm:$0xff]
      %v1924 = vld [vmem:[%s1892 + $0xf8] sm:$0xff]
      %v1929 = vrot.slane %v1888, 1
      %v1930 = vrot.slane %v1890, 1
      %v1931 = vsel %vm1080, %v1929, %v1930
      %v1932 = vrot.slane %v1889, 1
      %v1933 = vrot.slane %v1891, 1
      %v1934 = vsel %vm1080, %v1932, %v1933
      %v1969 = vunpack.c.l.b16 %v1893
      %v1970 = vunpack.c.h.b16 %v1893
      %v1971 = vunpack.c.l.b16 %v1894
      %v1972 = vunpack.c.h.b16 %v1894
      %v1973 = vunpack.c.l.b16 %v1895
      %v1974 = vunpack.c.h.b16 %v1895
      %v1975 = vunpack.c.l.b16 %v1896
      %v1976 = vunpack.c.h.b16 %v1896
      %v1977 = vunpack.c.l.b16 %v1897
      %v1978 = vunpack.c.h.b16 %v1897
      %v1979 = vunpack.c.l.b16 %v1898
      %v1980 = vunpack.c.h.b16 %v1898
      %v1981 = vunpack.c.l.b16 %v1899
      %v1982 = vunpack.c.h.b16 %v1899
      %v1983 = vunpack.c.l.b16 %v1900
      %v1984 = vunpack.c.h.b16 %v1900
      %v1985 = vunpack.c.l.b16 %v1901
      %v1986 = vunpack.c.h.b16 %v1901
      %v1987 = vunpack.c.l.b16 %v1902
      %v1988 = vunpack.c.h.b16 %v1902
      %v1989 = vunpack.c.l.b16 %v1903
      %v1990 = vunpack.c.h.b16 %v1903
      %v1991 = vunpack.c.l.b16 %v1904
      %v1992 = vunpack.c.h.b16 %v1904
      %v1993 = vunpack.c.l.b16 %v1905
      %v1994 = vunpack.c.h.b16 %v1905
      %v1995 = vunpack.c.l.b16 %v1906
      %v1996 = vunpack.c.h.b16 %v1906
      %v1997 = vunpack.c.l.b16 %v1907
      %v1998 = vunpack.c.h.b16 %v1907
      %v1999 = vunpack.c.l.b16 %v1908
      %v2000 = vunpack.c.h.b16 %v1908
      %v2001 = vunpack.c.l.b16 %v1909
      %v2002 = vunpack.c.h.b16 %v1909
      %v2003 = vunpack.c.l.b16 %v1910
      %v2004 = vunpack.c.h.b16 %v1910
      %v2005 = vunpack.c.l.b16 %v1911
      %v2006 = vunpack.c.h.b16 %v1911
      %v2007 = vunpack.c.l.b16 %v1912
      %v2008 = vunpack.c.h.b16 %v1912
      %v2009 = vunpack.c.l.b16 %v1913
      %v2010 = vunpack.c.h.b16 %v1913
      %v2011 = vunpack.c.l.b16 %v1914
      %v2012 = vunpack.c.h.b16 %v1914
      %v2013 = vunpack.c.l.b16 %v1915
      %v2014 = vunpack.c.h.b16 %v1915
      %v2015 = vunpack.c.l.b16 %v1916
      %v2016 = vunpack.c.h.b16 %v1916
      %v2017 = vunpack.c.l.b16 %v1917
      %v2018 = vunpack.c.h.b16 %v1917
      %v2019 = vunpack.c.l.b16 %v1918
      %v2020 = vunpack.c.h.b16 %v1918
      %v2021 = vunpack.c.l.b16 %v1919
      %v2022 = vunpack.c.h.b16 %v1919
      %v2023 = vunpack.c.l.b16 %v1920
      %v2024 = vunpack.c.h.b16 %v1920
      %v2025 = vunpack.c.l.b16 %v1921
      %v2026 = vunpack.c.h.b16 %v1921
      %v2027 = vunpack.c.l.b16 %v1922
      %v2028 = vunpack.c.h.b16 %v1922
      %v2029 = vunpack.c.l.b16 %v1923
      %v2030 = vunpack.c.h.b16 %v1923
      %v2031 = vunpack.c.l.b16 %v1924
      %v2032 = vunpack.c.h.b16 %v1924
      %v2033 = vpack.c.b16 %v1971, %v1969
      %v2034 = vpack.c.b16 %v1972, %v1970
      %v2035 = vpack.c.b16 %v1975, %v1973
      %v2036 = vpack.c.b16 %v1976, %v1974
      %v2037 = vpack.c.b16 %v1979, %v1977
      %v2038 = vpack.c.b16 %v1980, %v1978
      %v2039 = vpack.c.b16 %v1983, %v1981
      %v2040 = vpack.c.b16 %v1984, %v1982
      %v2041 = vpack.c.b16 %v1987, %v1985
      %v2042 = vpack.c.b16 %v1988, %v1986
      %v2043 = vpack.c.b16 %v1991, %v1989
      %v2044 = vpack.c.b16 %v1992, %v1990
      %v2045 = vpack.c.b16 %v1995, %v1993
      %v2046 = vpack.c.b16 %v1996, %v1994
      %v2047 = vpack.c.b16 %v1999, %v1997
      %v2048 = vpack.c.b16 %v2000, %v1998
      %v2049 = vpack.c.b16 %v2003, %v2001
      %v2050 = vpack.c.b16 %v2004, %v2002
      %v2051 = vpack.c.b16 %v2007, %v2005
      %v2052 = vpack.c.b16 %v2008, %v2006
      %v2053 = vpack.c.b16 %v2011, %v2009
      %v2054 = vpack.c.b16 %v2012, %v2010
      %v2055 = vpack.c.b16 %v2015, %v2013
      %v2056 = vpack.c.b16 %v2016, %v2014
      %v2057 = vpack.c.b16 %v2019, %v2017
      %v2058 = vpack.c.b16 %v2020, %v2018
      %v2059 = vpack.c.b16 %v2023, %v2021
      %v2060 = vpack.c.b16 %v2024, %v2022
      %v2061 = vpack.c.b16 %v2027, %v2025
      %v2062 = vpack.c.b16 %v2028, %v2026
      %v2063 = vpack.c.b16 %v2031, %v2029
      %v2064 = vpack.c.b16 %v2032, %v2030
      %2097 = vmatprep.subr.bf16.mxu0 %v2034
      %2098 = vmatpush1.bf16.msra.mxu0 %v2033
      %2099 = vmatprep.subr.bf16.mxu0 %v2036
      %2100 = vmatpush1.bf16.msra.mxu0 %v2035
      %2101 = vmatprep.subr.bf16.mxu0 %v2038
      %2102 = vmatpush1.bf16.msra.mxu0 %v2037
      %2103 = vmatprep.subr.bf16.mxu0 %v2040
      %2104 = vmatpush1.bf16.msra.mxu0 %v2039
      %2105 = vmatprep.subr.bf16.mxu0 %v2042
      %2106 = vmatpush1.bf16.msra.mxu0 %v2041
      %2107 = vmatprep.subr.bf16.mxu0 %v2044
      %2108 = vmatpush1.bf16.msra.mxu0 %v2043
      %2109 = vmatprep.subr.bf16.mxu0 %v2046
      %2110 = vmatpush1.bf16.msra.mxu0 %v2045
      %2111 = vmatprep.subr.bf16.mxu0 %v2048
      %2112 = vmatpush1.bf16.msra.mxu0 %v2047
      %2113 = vmatprep.subr.bf16.mxu0 %v2050
      %2114 = vmatpush1.bf16.msra.mxu0 %v2049
      %2115 = vmatprep.subr.bf16.mxu0 %v2052
      %2116 = vmatpush1.bf16.msra.mxu0 %v2051
      %2117 = vmatprep.subr.bf16.mxu0 %v2054
      %2118 = vmatpush1.bf16.msra.mxu0 %v2053
      %2119 = vmatprep.subr.bf16.mxu0 %v2056
      %2120 = vmatpush1.bf16.msra.mxu0 %v2055
      %2121 = vmatprep.subr.bf16.mxu0 %v2058
      %2122 = vmatpush1.bf16.msra.mxu0 %v2057
      %2123 = vmatprep.subr.bf16.mxu0 %v2060
      %2124 = vmatpush1.bf16.msra.mxu0 %v2059
      %2125 = vmatprep.subr.bf16.mxu0 %v2062
      %2126 = vmatpush1.bf16.msra.mxu0 %v2061
      %2127 = vmatprep.subr.bf16.mxu0 %v2064
      %2128 = vmatpush1.bf16.msra.mxu0 %v2063
      %2129 = vmatprep.mubr.bf16.mxu0 %v1934
      %2130 = vmatmul.mubr.bf16.gmra.mrb[0].mxu0 %v1931
      %v2131 = vpop.f32.mrb[0].mxu0
      %v2132 = vadd.f32 0.0, %v2131
      %v2133 = vpop.f32.mrb[0].mxu0
      %v2134 = vadd.f32 0.0, %v2133
      %v2135 = vpop.f32.mrb[0].mxu0
      %v2136 = vadd.f32 0.0, %v2135
      %v2137 = vpop.f32.mrb[0].mxu0
      %v2138 = vadd.f32 0.0, %v2137
      %2139 = vdwg.mxu0
      %v2140 = vadd.f32 %v1876, %v2132
      %v2141 = vadd.f32 %v1878, %v2134
      %v2142 = vadd.f32 %v1880, %v2136
      %v2143 = vadd.f32 %v1882, %v2138
      %v2144 = vld [vmem:[%s4] sm:$0x3]
      %v2146 = vlaneseq
      %v2147 = vshrl.u32 %v2146, 7
      %v2148 = vsub.s32 0, %v2147
      %v2149 = vrot.slane %v2144, %v2148
      %v2150 = vlaneseq
      %v2151 = vshrl.u32 %v2150, 7
      %v2152 = vsub.s32 1, %v2151
      %v2153 = vrot.slane %v2144, %v2152
      %v2156 = vadd.f32 %v2140, %v2149
      %v2157 = vadd.f32 %v2141, %v2153
      %v2158 = vadd.f32 %v2142, %v2149
      %v2159 = vadd.f32 %v2143, %v2153
      %v2160 = vadd.f32 %v2156, %v2158
      %v2161 = vrot.slane %v2160, 4
      %v2162 = vadd.f32 %v2160, %v2161
      %v2163 = vrot.slane %v2162, 2
      %v2164 = vadd.f32 %v2162, %v2163
      %v2165 = vrot.slane %v2164, 1
      %v2166 = vadd.f32 %v2164, %v2165
      %v2167 = vadd.f32 %v2157, %v2159
      %v2168 = vrot.slane %v2167, 4
      %v2169 = vadd.f32 %v2167, %v2168
      %v2170 = vrot.slane %v2169, 2
      %v2171 = vadd.f32 %v2169, %v2170
      %v2172 = vrot.slane %v2171, 1
      %v2173 = vadd.f32 %v2171, %v2172
      %v2174 = vld [vmem:[%s5] sm:$0xff]
      %v2175 = vld [vmem:[%s5 + $0x8] sm:$0xff]
      %v2176 = vld [vmem:[%s5 + $0x10] sm:$0xff]
      %v2177 = vld [vmem:[%s5 + $0x18] sm:$0xff]
      %v2178 = vld [vmem:[%s5 + $0x20] sm:$0xff]
      %v2179 = vld [vmem:[%s5 + $0x28] sm:$0xff]
      %v2180 = vld [vmem:[%s5 + $0x30] sm:$0xff]
      %v2181 = vld [vmem:[%s5 + $0x38] sm:$0xff]
      %v2182 = vld [vmem:[%s5 + $0x40] sm:$0xff]
      %v2183 = vld [vmem:[%s5 + $0x48] sm:$0xff]
      %v2184 = vld [vmem:[%s5 + $0x50] sm:$0xff]
      %v2185 = vld [vmem:[%s5 + $0x58] sm:$0xff]
      %v2186 = vld [vmem:[%s5 + $0x60] sm:$0xff]
      %v2187 = vld [vmem:[%s5 + $0x68] sm:$0xff]
      %v2188 = vld [vmem:[%s5 + $0x70] sm:$0xff]
      %v2189 = vld [vmem:[%s5 + $0x78] sm:$0xff]
      %v2190 = vld [vmem:[%s5 + $0x80] sm:$0xff]
      %v2191 = vld [vmem:[%s5 + $0x88] sm:$0xff]
      %v2192 = vld [vmem:[%s5 + $0x90] sm:$0xff]
      %v2193 = vld [vmem:[%s5 + $0x98] sm:$0xff]
      %v2194 = vld [vmem:[%s5 + $0xa0] sm:$0xff]
      %v2195 = vld [vmem:[%s5 + $0xa8] sm:$0xff]
      %v2196 = vld [vmem:[%s5 + $0xb0] sm:$0xff]
      %v2197 = vld [vmem:[%s5 + $0xb8] sm:$0xff]
      %v2198 = vld [vmem:[%s5 + $0xc0] sm:$0xff]
      %v2199 = vld [vmem:[%s5 + $0xc8] sm:$0xff]
      %v2200 = vld [vmem:[%s5 + $0xd0] sm:$0xff]
      %v2201 = vld [vmem:[%s5 + $0xd8] sm:$0xff]
      %v2202 = vld [vmem:[%s5 + $0xe0] sm:$0xff]
      %v2203 = vld [vmem:[%s5 + $0xe8] sm:$0xff]
      %v2204 = vld [vmem:[%s5 + $0xf0] sm:$0xff]
      %v2205 = vld [vmem:[%s5 + $0xf8] sm:$0xff]
      %2206 = vmatprep.subr.mxu0 0.0
      %2207 = vmatpush1.msra.mxu0 %v2174
      %2208 = vmatprep.subr.mxu0 0.0
      %2209 = vmatpush1.msra.mxu0 %v2175
      %2210 = vmatprep.subr.mxu0 0.0
      %2211 = vmatpush1.msra.mxu0 %v2176
      %2212 = vmatprep.subr.mxu0 0.0
      %2213 = vmatpush1.msra.mxu0 %v2177
      %2214 = vmatprep.subr.mxu0 0.0
      %2215 = vmatpush1.msra.mxu0 %v2178
      %2216 = vmatprep.subr.mxu0 0.0
      %2217 = vmatpush1.msra.mxu0 %v2179
      %2218 = vmatprep.subr.mxu0 0.0
      %2219 = vmatpush1.msra.mxu0 %v2180
      %2220 = vmatprep.subr.mxu0 0.0
      %2221 = vmatpush1.msra.mxu0 %v2181
      %2222 = vmatprep.subr.mxu0 0.0
      %2223 = vmatpush1.msra.mxu0 %v2182
      %2224 = vmatprep.subr.mxu0 0.0
      %2225 = vmatpush1.msra.mxu0 %v2183
      %2226 = vmatprep.subr.mxu0 0.0
      %2227 = vmatpush1.msra.mxu0 %v2184
      %2228 = vmatprep.subr.mxu0 0.0
      %2229 = vmatpush1.msra.mxu0 %v2185
      %2230 = vmatprep.subr.mxu0 0.0
      %2231 = vmatpush1.msra.mxu0 %v2186
      %2232 = vmatprep.subr.mxu0 0.0
      %2233 = vmatpush1.msra.mxu0 %v2187
      %2234 = vmatprep.subr.mxu0 0.0
      %2235 = vmatpush1.msra.mxu0 %v2188
      %2236 = vmatprep.subr.mxu0 0.0
      %2237 = vmatpush1.msra.mxu0 %v2189
      %2238 = vmatprep.subr.mxu0 0.0
      %2239 = vmatpush1.msra.mxu0 %v2190
      %2240 = vmatprep.subr.mxu0 0.0
      %2241 = vmatpush1.msra.mxu0 %v2191
      %2242 = vmatprep.subr.mxu0 0.0
      %2243 = vmatpush1.msra.mxu0 %v2192
      %2244 = vmatprep.subr.mxu0 0.0
      %2245 = vmatpush1.msra.mxu0 %v2193
      %2246 = vmatprep.subr.mxu0 0.0
      %2247 = vmatpush1.msra.mxu0 %v2194
      %2248 = vmatprep.subr.mxu0 0.0
      %2249 = vmatpush1.msra.mxu0 %v2195
      %2250 = vmatprep.subr.mxu0 0.0
      %2251 = vmatpush1.msra.mxu0 %v2196
      %2252 = vmatprep.subr.mxu0 0.0
      %2253 = vmatpush1.msra.mxu0 %v2197
      %2254 = vmatprep.subr.mxu0 0.0
      %2255 = vmatpush1.msra.mxu0 %v2198
      %2256 = vmatprep.subr.mxu0 0.0
      %2257 = vmatpush1.msra.mxu0 %v2199
      %2258 = vmatprep.subr.mxu0 0.0
      %2259 = vmatpush1.msra.mxu0 %v2200
      %2260 = vmatprep.subr.mxu0 0.0
      %2261 = vmatpush1.msra.mxu0 %v2201
      %2262 = vmatprep.subr.mxu0 0.0
      %2263 = vmatpush1.msra.mxu0 %v2202
      %2264 = vmatprep.subr.mxu0 0.0
      %2265 = vmatpush1.msra.mxu0 %v2203
      %2266 = vmatprep.subr.mxu0 0.0
      %2267 = vmatpush1.msra.mxu0 %v2204
      %2268 = vmatprep.subr.mxu0 0.0
      %2269 = vmatpush1.msra.mxu0 %v2205
      %2270 = vmatprep.mubr.f32.mxu0 %v2173
      %2271 = vmatmul.mubr.f32.gmra.mrb[0].mxu0 %v2166
      %v2272 = vpop.f32.mrb[0].mxu0
      %v2273 = vadd.f32 0.0, %v2272
      %v2274 = vpop.f32.mrb[0].mxu0
      %2275 = vdwg.mxu0
      %v2276 = vmul.f32 %v2273, 0.00390625
      %v2277 = vld [vmem:[%s6] sm:$0xff]
      %v2278 = vld [vmem:[%s6 + $0x8] sm:$0xff]
      %v2279 = vld [vmem:[%s7] sm:$0x1]
      %vm2280 = vcmask 130048
      %v2282 = vsel %vm2280, %v2276, 0
      %2284 = vmatprep.subr.mxu0 0.0
      %2285 = vmatpush1.msra.mxu0 %v2277
      %2286 = vmatprep.subr.mxu0 0.0
      %2287 = vmatpush1.msra.mxu0 %v2278
      %2288 = vmatprep.subr.mxu0 0.0
      %2289 = vmatpush1.msra.mxu0 0.0
      %2290 = vmatprep.subr.mxu0 0.0
      %2291 = vmatpush1.msra.mxu0 0.0
      %2292 = vmatprep.subr.mxu0 0.0
      %2293 = vmatpush1.msra.mxu0 0.0
      %2294 = vmatprep.subr.mxu0 0.0
      %2295 = vmatpush1.msra.mxu0 0.0
      %2296 = vmatprep.subr.mxu0 0.0
      %2297 = vmatpush1.msra.mxu0 0.0
      %2298 = vmatprep.subr.mxu0 0.0
      %2299 = vmatpush1.msra.mxu0 0.0
      %2300 = vmatprep.subr.mxu0 0.0
      %2301 = vmatpush1.msra.mxu0 0.0
      %2302 = vmatprep.subr.mxu0 0.0
      %2303 = vmatpush1.msra.mxu0 0.0
      %2304 = vmatprep.subr.mxu0 0.0
      %2305 = vmatpush1.msra.mxu0 0.0
      %2306 = vmatprep.subr.mxu0 0.0
      %2307 = vmatpush1.msra.mxu0 0.0
      %2308 = vmatprep.subr.mxu0 0.0
      %2309 = vmatpush1.msra.mxu0 0.0
      %2310 = vmatprep.subr.mxu0 0.0
      %2311 = vmatpush1.msra.mxu0 0.0
      %2312 = vmatprep.subr.mxu0 0.0
      %2313 = vmatpush1.msra.mxu0 0.0
      %2314 = vmatprep.subr.mxu0 0.0
      %2315 = vmatpush1.msra.mxu0 0.0
      %2316 = vmatprep.subr.mxu0 0.0
      %2317 = vmatpush1.msra.mxu0 0.0
      %2318 = vmatprep.subr.mxu0 0.0
      %2319 = vmatpush1.msra.mxu0 0.0
      %2320 = vmatprep.subr.mxu0 0.0
      %2321 = vmatpush1.msra.mxu0 0.0
      %2322 = vmatprep.subr.mxu0 0.0
      %2323 = vmatpush1.msra.mxu0 0.0
      %2324 = vmatprep.subr.mxu0 0.0
      %2325 = vmatpush1.msra.mxu0 0.0
      %2326 = vmatprep.subr.mxu0 0.0
      %2327 = vmatpush1.msra.mxu0 0.0
      %2328 = vmatprep.subr.mxu0 0.0
      %2329 = vmatpush1.msra.mxu0 0.0
      %2330 = vmatprep.subr.mxu0 0.0
      %2331 = vmatpush1.msra.mxu0 0.0
      %2332 = vmatprep.subr.mxu0 0.0
      %2333 = vmatpush1.msra.mxu0 0.0
      %2334 = vmatprep.subr.mxu0 0.0
      %2335 = vmatpush1.msra.mxu0 0.0
      %2336 = vmatprep.subr.mxu0 0.0
      %2337 = vmatpush1.msra.mxu0 0.0
      %2338 = vmatprep.subr.mxu0 0.0
      %2339 = vmatpush1.msra.mxu0 0.0
      %2340 = vmatprep.subr.mxu0 0.0
      %2341 = vmatpush1.msra.mxu0 0.0
      %2342 = vmatprep.subr.mxu0 0.0
      %2343 = vmatpush1.msra.mxu0 0.0
      %2344 = vmatprep.subr.mxu0 0.0
      %2345 = vmatpush1.msra.mxu0 0.0
      %2346 = vmatprep.subr.mxu0 0.0
      %2347 = vmatpush1.msra.mxu0 0.0
      %2348 = vmatprep.mubr.f32.mxu0 0.0
      %2349 = vmatmul.mubr.f32.gmra.mrb[0].mxu0 %v2282
      %v2350 = vpop.f32.mrb[0].mxu0
      %v2351 = vadd.f32 %v2279, %v2350
      %v2352 = vpop.f32.mrb[0].mxu0
      %2353 = vdwg.mxu0
      %v2354 = vmax.f32 %v2351, 0.0
      %v2355 = vld [vmem:[%s8] sm:$0x3]
      %v2356 = vld [vmem:[%s9] sm:$0x1]
      %vm2357 = vcmask 15360
      %v2359 = vsel %vm2357, %v2354, 0
      %vm2361 = vcmask 1041408
      %v2363 = vsel %vm2361, %v2355, 0
      %2365 = vmatprep.subr.mxu0 0.0
      %2366 = vmatpush1.msra.mxu0 %v2363
      %2367 = vmatprep.subr.mxu0 0.0
      %2368 = vmatpush1.msra.mxu0 0.0
      %2369 = vmatprep.subr.mxu0 0.0
      %2370 = vmatpush1.msra.mxu0 0.0
      %2371 = vmatprep.subr.mxu0 0.0
      %2372 = vmatpush1.msra.mxu0 0.0
      %2373 = vmatprep.subr.mxu0 0.0
      %2374 = vmatpush1.msra.mxu0 0.0
      %2375 = vmatprep.subr.mxu0 0.0
      %2376 = vmatpush1.msra.mxu0 0.0
      %2377 = vmatprep.subr.mxu0 0.0
      %2378 = vmatpush1.msra.mxu0 0.0
      %2379 = vmatprep.subr.mxu0 0.0
      %2380 = vmatpush1.msra.mxu0 0.0
      %2381 = vmatprep.subr.mxu0 0.0
      %2382 = vmatpush1.msra.mxu0 0.0
      %2383 = vmatprep.subr.mxu0 0.0
      %2384 = vmatpush1.msra.mxu0 0.0
      %2385 = vmatprep.subr.mxu0 0.0
      %2386 = vmatpush1.msra.mxu0 0.0
      %2387 = vmatprep.subr.mxu0 0.0
      %2388 = vmatpush1.msra.mxu0 0.0
      %2389 = vmatprep.subr.mxu0 0.0
      %2390 = vmatpush1.msra.mxu0 0.0
      %2391 = vmatprep.subr.mxu0 0.0
      %2392 = vmatpush1.msra.mxu0 0.0
      %2393 = vmatprep.subr.mxu0 0.0
      %2394 = vmatpush1.msra.mxu0 0.0
      %2395 = vmatprep.subr.mxu0 0.0
      %2396 = vmatpush1.msra.mxu0 0.0
      %2397 = vmatprep.subr.mxu0 0.0
      %2398 = vmatpush1.msra.mxu0 0.0
      %2399 = vmatprep.subr.mxu0 0.0
      %2400 = vmatpush1.msra.mxu0 0.0
      %2401 = vmatprep.subr.mxu0 0.0
      %2402 = vmatpush1.msra.mxu0 0.0
      %2403 = vmatprep.subr.mxu0 0.0
      %2404 = vmatpush1.msra.mxu0 0.0
      %2405 = vmatprep.subr.mxu0 0.0
      %2406 = vmatpush1.msra.mxu0 0.0
      %2407 = vmatprep.subr.mxu0 0.0
      %2408 = vmatpush1.msra.mxu0 0.0
      %2409 = vmatprep.subr.mxu0 0.0
      %2410 = vmatpush1.msra.mxu0 0.0
      %2411 = vmatprep.subr.mxu0 0.0
      %2412 = vmatpush1.msra.mxu0 0.0
      %2413 = vmatprep.subr.mxu0 0.0
      %2414 = vmatpush1.msra.mxu0 0.0
      %2415 = vmatprep.subr.mxu0 0.0
      %2416 = vmatpush1.msra.mxu0 0.0
      %2417 = vmatprep.subr.mxu0 0.0
      %2418 = vmatpush1.msra.mxu0 0.0
      %2419 = vmatprep.subr.mxu0 0.0
      %2420 = vmatpush1.msra.mxu0 0.0
      %2421 = vmatprep.subr.mxu0 0.0
      %2422 = vmatpush1.msra.mxu0 0.0
      %2423 = vmatprep.subr.mxu0 0.0
      %2424 = vmatpush1.msra.mxu0 0.0
      %2425 = vmatprep.subr.mxu0 0.0
      %2426 = vmatpush1.msra.mxu0 0.0
      %2427 = vmatprep.subr.mxu0 0.0
      %2428 = vmatpush1.msra.mxu0 0.0
      %2429 = vmatprep.mubr.f32.mxu0 0.0
      %2430 = vmatmul.mubr.f32.gmra.mrb[0].mxu0 %v2359
      %v2431 = vpop.f32.mrb[0].mxu0
      %v2432 = vadd.f32 %v2356, %v2431
      %v2433 = vpop.f32.mrb[0].mxu0
      %2434 = vdwg.mxu0
      %v2435 = vxor.u32 %v2432, 2147483648
      %v2436 = vmul.f32 %v2435, 1.442695
      %v2437 = vpow.pop %v2436
      %v2438 = vadd.f32 %v2437, 1.0
      %v2439 = vrcp.pop %v2438
      %v2440 = vmul.f32 1.0, %v2439
      %v2441 = vld [vmem:[%s10] sm:$0xff]
      %v2442 = vld [vmem:[%s10 + $0x8] sm:$0xff]
      %v2443 = vld [vmem:[%s10 + $0x10] sm:$0xff]
      %v2444 = vld [vmem:[%s10 + $0x18] sm:$0xff]
      %v2446 = vsel %vm2280, %v2440, 0
      %2448 = vmatprep.subr.mxu0 %v2442
      %2449 = vmatpush1.msra.mxu0 %v2441
      %2450 = vmatprep.subr.mxu0 %v2444
      %2451 = vmatpush1.msra.mxu0 %v2443
      %2452 = vmatprep.subr.mxu0 0.0
      %2453 = vmatpush1.msra.mxu0 0.0
      %2454 = vmatprep.subr.mxu0 0.0
      %2455 = vmatpush1.msra.mxu0 0.0
      %2456 = vmatprep.subr.mxu0 0.0
      %2457 = vmatpush1.msra.mxu0 0.0
      %2458 = vmatprep.subr.mxu0 0.0
      %2459 = vmatpush1.msra.mxu0 0.0
      %2460 = vmatprep.subr.mxu0 0.0
      %2461 = vmatpush1.msra.mxu0 0.0
      %2462 = vmatprep.subr.mxu0 0.0
      %2463 = vmatpush1.msra.mxu0 0.0
      %2464 = vmatprep.subr.mxu0 0.0
      %2465 = vmatpush1.msra.mxu0 0.0
      %2466 = vmatprep.subr.mxu0 0.0
      %2467 = vmatpush1.msra.mxu0 0.0
      %2468 = vmatprep.subr.mxu0 0.0
      %2469 = vmatpush1.msra.mxu0 0.0
      %2470 = vmatprep.subr.mxu0 0.0
      %2471 = vmatpush1.msra.mxu0 0.0
      %2472 = vmatprep.subr.mxu0 0.0
      %2473 = vmatpush1.msra.mxu0 0.0
      %2474 = vmatprep.subr.mxu0 0.0
      %2475 = vmatpush1.msra.mxu0 0.0
      %2476 = vmatprep.subr.mxu0 0.0
      %2477 = vmatpush1.msra.mxu0 0.0
      %2478 = vmatprep.subr.mxu0 0.0
      %2479 = vmatpush1.msra.mxu0 0.0
      %2480 = vmatprep.subr.mxu0 0.0
      %2481 = vmatpush1.msra.mxu0 0.0
      %2482 = vmatprep.subr.mxu0 0.0
      %2483 = vmatpush1.msra.mxu0 0.0
      %2484 = vmatprep.subr.mxu0 0.0
      %2485 = vmatpush1.msra.mxu0 0.0
      %2486 = vmatprep.subr.mxu0 0.0
      %2487 = vmatpush1.msra.mxu0 0.0
      %2488 = vmatprep.subr.mxu0 0.0
      %2489 = vmatpush1.msra.mxu0 0.0
      %2490 = vmatprep.subr.mxu0 0.0
      %2491 = vmatpush1.msra.mxu0 0.0
      %2492 = vmatprep.subr.mxu0 0.0
      %2493 = vmatpush1.msra.mxu0 0.0
      %2494 = vmatprep.subr.mxu0 0.0
      %2495 = vmatpush1.msra.mxu0 0.0
      %2496 = vmatprep.subr.mxu0 0.0
      %2497 = vmatpush1.msra.mxu0 0.0
      %2498 = vmatprep.subr.mxu0 0.0
      %2499 = vmatpush1.msra.mxu0 0.0
      %2500 = vmatprep.subr.mxu0 0.0
      %2501 = vmatpush1.msra.mxu0 0.0
      %2502 = vmatprep.subr.mxu0 0.0
      %2503 = vmatpush1.msra.mxu0 0.0
      %2504 = vmatprep.subr.mxu0 0.0
      %2505 = vmatpush1.msra.mxu0 0.0
      %2506 = vmatprep.subr.mxu0 0.0
      %2507 = vmatpush1.msra.mxu0 0.0
      %2508 = vmatprep.subr.mxu0 0.0
      %2509 = vmatpush1.msra.mxu0 0.0
      %2510 = vmatprep.subr.mxu0 0.0
      %2511 = vmatpush1.msra.mxu0 0.0
      %2512 = vmatprep.mubr.f32.mxu0 0.0
      %2513 = vmatmul.mubr.f32.gmra.mrb[0].mxu0 %v2446
      %v2514 = vpop.f32.mrb[0].mxu0
      %v2515 = vadd.f32 0.0, %v2514
      %v2516 = vpop.f32.mrb[0].mxu0
      %v2517 = vadd.f32 0.0, %v2516
      %2518 = vdwg.mxu0
      %v2519 = vlaneseq
      %v2520 = vshrl.u32 %v2519, 7
      %v2521 = vsub.s32 0, %v2520
      %v2522 = vrot.slane %v2515, %v2521
      %v2523 = vlaneseq
      %v2524 = vshrl.u32 %v2523, 7
      %v2525 = vsub.s32 0, %v2524
      %v2526 = vrot.slane %v2517, %v2525
      %v2527 = vmul.f32 %v2156, %v2522
      %v2528 = vmul.f32 %v2157, %v2526
      %v2529 = vmul.f32 %v2158, %v2522
      %v2530 = vmul.f32 %v2159, %v2526
      %v2531 = vpack.c.bf16 %v2529, %v2527
      %v2532 = vpack.c.bf16 %v2530, %v2528
      %v2533 = vld [vmem:[%s11] sm:$0xf]
      %v2534 = vld [vmem:[%s11 + $0x4] sm:$0xf]
      %v2535 = vld [vmem:[%s11 + $0x8] sm:$0xf]
      %v2536 = vld [vmem:[%s11 + $0xc] sm:$0xf]
      %v2537 = vld [vmem:[%s11 + $0x10] sm:$0xf]
      %v2538 = vld [vmem:[%s11 + $0x14] sm:$0xf]
      %v2539 = vld [vmem:[%s11 + $0x18] sm:$0xf]
      %v2540 = vld [vmem:[%s11 + $0x1c] sm:$0xf]
      %v2541 = vld [vmem:[%s11 + $0x20] sm:$0xf]
      %v2542 = vld [vmem:[%s11 + $0x24] sm:$0xf]
      %v2543 = vld [vmem:[%s11 + $0x28] sm:$0xf]
      %v2544 = vld [vmem:[%s11 + $0x2c] sm:$0xf]
      %v2545 = vld [vmem:[%s11 + $0x30] sm:$0xf]
      %v2546 = vld [vmem:[%s11 + $0x34] sm:$0xf]
      %v2547 = vld [vmem:[%s11 + $0x38] sm:$0xf]
      %v2548 = vld [vmem:[%s11 + $0x3c] sm:$0xf]
      %v2549 = vld [vmem:[%s11 + $0x40] sm:$0xf]
      %v2550 = vld [vmem:[%s11 + $0x44] sm:$0xf]
      %v2551 = vld [vmem:[%s11 + $0x48] sm:$0xf]
      %v2552 = vld [vmem:[%s11 + $0x4c] sm:$0xf]
      %v2553 = vld [vmem:[%s11 + $0x50] sm:$0xf]
      %v2554 = vld [vmem:[%s11 + $0x54] sm:$0xf]
      %v2555 = vld [vmem:[%s11 + $0x58] sm:$0xf]
      %v2556 = vld [vmem:[%s11 + $0x5c] sm:$0xf]
      %v2557 = vld [vmem:[%s11 + $0x60] sm:$0xf]
      %v2558 = vld [vmem:[%s11 + $0x64] sm:$0xf]
      %v2559 = vld [vmem:[%s11 + $0x68] sm:$0xf]
      %v2560 = vld [vmem:[%s11 + $0x6c] sm:$0xf]
      %v2561 = vld [vmem:[%s11 + $0x70] sm:$0xf]
      %v2562 = vld [vmem:[%s11 + $0x74] sm:$0xf]
      %v2563 = vld [vmem:[%s11 + $0x78] sm:$0xf]
      %v2564 = vld [vmem:[%s11 + $0x7c] sm:$0xf]
      %v2565 = vld [vmem:[%s12] sm:$0x1]
      %v2567 = vlaneseq
      %v2568 = vshrl.u32 %v2567, 7
      %v2569 = vsub.s32 0, %v2568
      %v2570 = vrot.slane %v2565, %v2569
      %v2604 = vunpack.c.l.b16 %v2533
      %v2605 = vunpack.c.l.b16 %v2534
      %v2606 = vunpack.c.l.b16 %v2535
      %v2607 = vunpack.c.l.b16 %v2536
      %v2608 = vunpack.c.l.b16 %v2537
      %v2609 = vunpack.c.l.b16 %v2538
      %v2610 = vunpack.c.l.b16 %v2539
      %v2611 = vunpack.c.l.b16 %v2540
      %v2612 = vunpack.c.l.b16 %v2541
      %v2613 = vunpack.c.l.b16 %v2542
      %v2614 = vunpack.c.l.b16 %v2543
      %v2615 = vunpack.c.l.b16 %v2544
      %v2616 = vunpack.c.l.b16 %v2545
      %v2617 = vunpack.c.l.b16 %v2546
      %v2618 = vunpack.c.l.b16 %v2547
      %v2619 = vunpack.c.l.b16 %v2548
      %v2620 = vunpack.c.l.b16 %v2549
      %v2621 = vunpack.c.l.b16 %v2550
      %v2622 = vunpack.c.l.b16 %v2551
      %v2623 = vunpack.c.l.b16 %v2552
      %v2624 = vunpack.c.l.b16 %v2553
      %v2625 = vunpack.c.l.b16 %v2554
      %v2626 = vunpack.c.l.b16 %v2555
      %v2627 = vunpack.c.l.b16 %v2556
      %v2628 = vunpack.c.l.b16 %v2557
      %v2629 = vunpack.c.l.b16 %v2558
      %v2630 = vunpack.c.l.b16 %v2559
      %v2631 = vunpack.c.l.b16 %v2560
      %v2632 = vunpack.c.l.b16 %v2561
      %v2633 = vunpack.c.l.b16 %v2562
      %v2634 = vunpack.c.l.b16 %v2563
      %v2635 = vunpack.c.l.b16 %v2564
      %v2636 = vpack.c.b16 %v2605, %v2604
      %v2637 = vpack.c.b16 %v2607, %v2606
      %v2638 = vpack.c.b16 %v2609, %v2608
      %v2639 = vpack.c.b16 %v2611, %v2610
      %v2640 = vpack.c.b16 %v2613, %v2612
      %v2641 = vpack.c.b16 %v2615, %v2614
      %v2642 = vpack.c.b16 %v2617, %v2616
      %v2643 = vpack.c.b16 %v2619, %v2618
      %v2644 = vpack.c.b16 %v2621, %v2620
      %v2645 = vpack.c.b16 %v2623, %v2622
      %v2646 = vpack.c.b16 %v2625, %v2624
      %v2647 = vpack.c.b16 %v2627, %v2626
      %v2648 = vpack.c.b16 %v2629, %v2628
      %v2649 = vpack.c.b16 %v2631, %v2630
      %v2650 = vpack.c.b16 %v2633, %v2632
      %v2651 = vpack.c.b16 %v2635, %v2634
      %2668 = vmatprep.subr.bf16.mxu0 0
      %2669 = vmatpush1.bf16.msra.mxu0 %v2636
      %2670 = vmatprep.subr.bf16.mxu0 0
      %2671 = vmatpush1.bf16.msra.mxu0 %v2637
      %2672 = vmatprep.subr.bf16.mxu0 0
      %2673 = vmatpush1.bf16.msra.mxu0 %v2638
      %2674 = vmatprep.subr.bf16.mxu0 0
      %2675 = vmatpush1.bf16.msra.mxu0 %v2639
      %2676 = vmatprep.subr.bf16.mxu0 0
      %2677 = vmatpush1.bf16.msra.mxu0 %v2640
      %2678 = vmatprep.subr.bf16.mxu0 0
      %2679 = vmatpush1.bf16.msra.mxu0 %v2641
      %2680 = vmatprep.subr.bf16.mxu0 0
      %2681 = vmatpush1.bf16.msra.mxu0 %v2642
      %2682 = vmatprep.subr.bf16.mxu0 0
      %2683 = vmatpush1.bf16.msra.mxu0 %v2643
      %2684 = vmatprep.subr.bf16.mxu0 0
      %2685 = vmatpush1.bf16.msra.mxu0 %v2644
      %2686 = vmatprep.subr.bf16.mxu0 0
      %2687 = vmatpush1.bf16.msra.mxu0 %v2645
      %2688 = vmatprep.subr.bf16.mxu0 0
      %2689 = vmatpush1.bf16.msra.mxu0 %v2646
      %2690 = vmatprep.subr.bf16.mxu0 0
      %2691 = vmatpush1.bf16.msra.mxu0 %v2647
      %2692 = vmatprep.subr.bf16.mxu0 0
      %2693 = vmatpush1.bf16.msra.mxu0 %v2648
      %2694 = vmatprep.subr.bf16.mxu0 0
      %2695 = vmatpush1.bf16.msra.mxu0 %v2649
      %2696 = vmatprep.subr.bf16.mxu0 0
      %2697 = vmatpush1.bf16.msra.mxu0 %v2650
      %2698 = vmatprep.subr.bf16.mxu0 0
      %2699 = vmatpush1.bf16.msra.mxu0 %v2651
      %2700 = vmatprep.mubr.bf16.mxu0 %v2532
      %2701 = vmatmul.mubr.bf16.gmra.mrb[0].mxu0 %v2531
      %v2702 = vpop.f32.mrb[0].mxu0
      %v2703 = vadd.f32 %v2570, %v2702
      %v2704 = vpop.f32.mrb[0].mxu0
      %v2705 = vpop.f32.mrb[0].mxu0
      %v2706 = vadd.f32 %v2570, %v2705
      %v2707 = vpop.f32.mrb[0].mxu0
      %2708 = vdwg.mxu0
      %v2709 = vmax.f32 %v2703, 0.0
      %v2710 = vmax.f32 %v2706, 0.0
      %v2711 = vld [vmem:[%s13] sm:$0xff]
      %v2712 = vld [vmem:[%s13 + $0x8] sm:$0xff]
      %v2713 = vld [vmem:[%s13 + $0x10] sm:$0xff]
      %v2714 = vld [vmem:[%s13 + $0x18] sm:$0xff]
      %v2715 = vld [vmem:[%s14] sm:$0x1]
      %v2717 = vlaneseq
      %v2718 = vshrl.u32 %v2717, 7
      %v2719 = vsub.s32 0, %v2718
      %v2720 = vrot.slane %v2715, %v2719
      %vm2722 = vcmask 261120
      %v2724 = vsel %vm2722, %v2709, 0
      %v2727 = vsel %vm2722, %v2710, 0
      %2729 = vmatprep.subr.mxu0 0.0
      %2730 = vmatpush1.msra.mxu0 %v2711
      %2731 = vmatprep.subr.mxu0 0.0
      %2732 = vmatpush1.msra.mxu0 %v2712
      %2733 = vmatprep.subr.mxu0 0.0
      %2734 = vmatpush1.msra.mxu0 %v2713
      %2735 = vmatprep.subr.mxu0 0.0
      %2736 = vmatpush1.msra.mxu0 %v2714
      %2737 = vmatprep.subr.mxu0 0.0
      %2738 = vmatpush1.msra.mxu0 0.0
      %2739 = vmatprep.subr.mxu0 0.0
      %2740 = vmatpush1.msra.mxu0 0.0
      %2741 = vmatprep.subr.mxu0 0.0
      %2742 = vmatpush1.msra.mxu0 0.0
      %2743 = vmatprep.subr.mxu0 0.0
      %2744 = vmatpush1.msra.mxu0 0.0
      %2745 = vmatprep.subr.mxu0 0.0
      %2746 = vmatpush1.msra.mxu0 0.0
      %2747 = vmatprep.subr.mxu0 0.0
      %2748 = vmatpush1.msra.mxu0 0.0
      %2749 = vmatprep.subr.mxu0 0.0
      %2750 = vmatpush1.msra.mxu0 0.0
      %2751 = vmatprep.subr.mxu0 0.0
      %2752 = vmatpush1.msra.mxu0 0.0
      %2753 = vmatprep.subr.mxu0 0.0
      %2754 = vmatpush1.msra.mxu0 0.0
      %2755 = vmatprep.subr.mxu0 0.0
      %2756 = vmatpush1.msra.mxu0 0.0
      %2757 = vmatprep.subr.mxu0 0.0
      %2758 = vmatpush1.msra.mxu0 0.0
      %2759 = vmatprep.subr.mxu0 0.0
      %2760 = vmatpush1.msra.mxu0 0.0
      %2761 = vmatprep.subr.mxu0 0.0
      %2762 = vmatpush1.msra.mxu0 0.0
      %2763 = vmatprep.subr.mxu0 0.0
      %2764 = vmatpush1.msra.mxu0 0.0
      %2765 = vmatprep.subr.mxu0 0.0
      %2766 = vmatpush1.msra.mxu0 0.0
      %2767 = vmatprep.subr.mxu0 0.0
      %2768 = vmatpush1.msra.mxu0 0.0
      %2769 = vmatprep.subr.mxu0 0.0
      %2770 = vmatpush1.msra.mxu0 0.0
      %2771 = vmatprep.subr.mxu0 0.0
      %2772 = vmatpush1.msra.mxu0 0.0
      %2773 = vmatprep.subr.mxu0 0.0
      %2774 = vmatpush1.msra.mxu0 0.0
      %2775 = vmatprep.subr.mxu0 0.0
      %2776 = vmatpush1.msra.mxu0 0.0
      %2777 = vmatprep.subr.mxu0 0.0
      %2778 = vmatpush1.msra.mxu0 0.0
      %2779 = vmatprep.subr.mxu0 0.0
      %2780 = vmatpush1.msra.mxu0 0.0
      %2781 = vmatprep.subr.mxu0 0.0
      %2782 = vmatpush1.msra.mxu0 0.0
      %2783 = vmatprep.subr.mxu0 0.0
      %2784 = vmatpush1.msra.mxu0 0.0
      %2785 = vmatprep.subr.mxu0 0.0
      %2786 = vmatpush1.msra.mxu0 0.0
      %2787 = vmatprep.subr.mxu0 0.0
      %2788 = vmatpush1.msra.mxu0 0.0
      %2789 = vmatprep.subr.mxu0 0.0
      %2790 = vmatpush1.msra.mxu0 0.0
      %2791 = vmatprep.subr.mxu0 0.0
      %2792 = vmatpush1.msra.mxu0 0.0
      %2793 = vmatprep.mubr.f32.mxu0 0.0
      %2794 = vmatmul.mubr.f32.gmra.mrb[0].mxu0 %v2724
      %v2795 = vpop.f32.mrb[0].mxu0
      %v2796 = vadd.f32 %v2720, %v2795
      %v2797 = vpop.f32.mrb[0].mxu0
      %2798 = vmatprep.mubr.f32.mxu0 0.0
      %2799 = vmatmul.mubr.f32.gmra.mrb[0].mxu0 %v2727
      %v2800 = vpop.f32.mrb[0].mxu0
      %v2801 = vadd.f32 %v2720, %v2800
      %v2802 = vpop.f32.mrb[0].mxu0
      %2803 = vdwg.mxu0
      %v2804 = vxor.u32 %v2796, 2147483648
      %v2805 = vxor.u32 %v2801, 2147483648
      %v2806 = vmul.f32 %v2804, 1.442695
      %v2807 = vpow.pop %v2806
      %v2808 = vmul.f32 %v2805, 1.442695
      %v2809 = vpow.pop %v2808
      %v2810 = vadd.f32 %v2807, 1.0
      %v2811 = vadd.f32 %v2809, 1.0
      %v2812 = vrcp.pop %v2810
      %v2813 = vmul.f32 1.0, %v2812
      %v2814 = vrcp.pop %v2811
      %v2815 = vmul.f32 1.0, %v2814
      %v2816 = vld [vmem:[%s15] sm:$0xff]
      %v2817 = vld [vmem:[%s15 + $0x8] sm:$0xff]
      %v2818 = vld [vmem:[%s15 + $0x10] sm:$0xff]
      %v2819 = vld [vmem:[%s15 + $0x18] sm:$0xff]
      %v2821 = vsel %vm2280, %v2813, 0
      %v2824 = vsel %vm2280, %v2815, 0
      %2826 = vmatprep.subr.mxu0 %v2817
      %2827 = vmatpush1.msra.mxu0 %v2816
      %2828 = vmatprep.subr.mxu0 %v2819
      %2829 = vmatpush1.msra.mxu0 %v2818
      %2830 = vmatprep.subr.mxu0 0.0
      %2831 = vmatpush1.msra.mxu0 0.0
      %2832 = vmatprep.subr.mxu0 0.0
      %2833 = vmatpush1.msra.mxu0 0.0
      %2834 = vmatprep.subr.mxu0 0.0
      %2835 = vmatpush1.msra.mxu0 0.0
      %2836 = vmatprep.subr.mxu0 0.0
      %2837 = vmatpush1.msra.mxu0 0.0
      %2838 = vmatprep.subr.mxu0 0.0
      %2839 = vmatpush1.msra.mxu0 0.0
      %2840 = vmatprep.subr.mxu0 0.0
      %2841 = vmatpush1.msra.mxu0 0.0
      %2842 = vmatprep.subr.mxu0 0.0
      %2843 = vmatpush1.msra.mxu0 0.0
      %2844 = vmatprep.subr.mxu0 0.0
      %2845 = vmatpush1.msra.mxu0 0.0
      %2846 = vmatprep.subr.mxu0 0.0
      %2847 = vmatpush1.msra.mxu0 0.0
      %2848 = vmatprep.subr.mxu0 0.0
      %2849 = vmatpush1.msra.mxu0 0.0
      %2850 = vmatprep.subr.mxu0 0.0
      %2851 = vmatpush1.msra.mxu0 0.0
      %2852 = vmatprep.subr.mxu0 0.0
      %2853 = vmatpush1.msra.mxu0 0.0
      %2854 = vmatprep.subr.mxu0 0.0
      %2855 = vmatpush1.msra.mxu0 0.0
      %2856 = vmatprep.subr.mxu0 0.0
      %2857 = vmatpush1.msra.mxu0 0.0
      %2858 = vmatprep.subr.mxu0 0.0
      %2859 = vmatpush1.msra.mxu0 0.0
      %2860 = vmatprep.subr.mxu0 0.0
      %2861 = vmatpush1.msra.mxu0 0.0
      %2862 = vmatprep.subr.mxu0 0.0
      %2863 = vmatpush1.msra.mxu0 0.0
      %2864 = vmatprep.subr.mxu0 0.0
      %2865 = vmatpush1.msra.mxu0 0.0
      %2866 = vmatprep.subr.mxu0 0.0
      %2867 = vmatpush1.msra.mxu0 0.0
      %2868 = vmatprep.subr.mxu0 0.0
      %2869 = vmatpush1.msra.mxu0 0.0
      %2870 = vmatprep.subr.mxu0 0.0
      %2871 = vmatpush1.msra.mxu0 0.0
      %2872 = vmatprep.subr.mxu0 0.0
      %2873 = vmatpush1.msra.mxu0 0.0
      %2874 = vmatprep.subr.mxu0 0.0
      %2875 = vmatpush1.msra.mxu0 0.0
      %2876 = vmatprep.subr.mxu0 0.0
      %2877 = vmatpush1.msra.mxu0 0.0
      %2878 = vmatprep.subr.mxu0 0.0
      %2879 = vmatpush1.msra.mxu0 0.0
      %2880 = vmatprep.subr.mxu0 0.0
      %2881 = vmatpush1.msra.mxu0 0.0
      %2882 = vmatprep.subr.mxu0 0.0
      %2883 = vmatpush1.msra.mxu0 0.0
      %2884 = vmatprep.subr.mxu0 0.0
      %2885 = vmatpush1.msra.mxu0 0.0
      %2886 = vmatprep.subr.mxu0 0.0
      %2887 = vmatpush1.msra.mxu0 0.0
      %2888 = vmatprep.subr.mxu0 0.0
      %2889 = vmatpush1.msra.mxu0 0.0
      %2890 = vmatprep.mubr.f32.mxu0 0.0
      %2891 = vmatmul.mubr.f32.gmra.mrb[0].mxu0 %v2821
      %v2892 = vpop.f32.mrb[0].mxu0
      %v2893 = vadd.f32 0.0, %v2892
      %v2894 = vpop.f32.mrb[0].mxu0
      %v2895 = vadd.f32 0.0, %v2894
      %2896 = vmatprep.mubr.f32.mxu0 0.0
      %2897 = vmatmul.mubr.f32.gmra.mrb[0].mxu0 %v2824
      %v2898 = vpop.f32.mrb[0].mxu0
      %v2899 = vadd.f32 0.0, %v2898
      %v2900 = vpop.f32.mrb[0].mxu0
      %v2901 = vadd.f32 0.0, %v2900
      %2902 = vdwg.mxu0
      %v2903 = vmul.f32 %v2527, %v2893
      %v2904 = vmul.f32 %v2528, %v2895
      %v2905 = vmul.f32 %v2529, %v2899
      %v2906 = vmul.f32 %v2530, %v2901
      %v2907 = vadd.f32 %v2903, %v1325
      %v2908 = vadd.f32 %v2904, %v1328
      %v2909 = vadd.f32 %v2905, %v1330
      %v2910 = vadd.f32 %v2906, %v1332
      %2911 = vst [vmem:[%s521] sm:$0xff] %v2907
      %2912 = vst [vmem:[%s521 + $0x8] sm:$0xff] %v2908
      %2913 = vst [vmem:[%s521 + $0x10] sm:$0xff] %v2909
      %2914 = vst [vmem:[%s521 + $0x18] sm:$0xff] %v2910
      %p2915 = scmp.lt.s32.totalorder %s27, 1
      %s2916 = scalar_select %p2915, %s27, 1
      %s2917 = smul.addr %s2916, 4
      %s2918 = smul.addr %s2917, 8
      %s2919 = scalar_lea.vmem %s16, %s2918
      // Predicated region
      $region85: #{dehaze_block.1} parent=83 // pred_check
        %p2920 = pneg %p386
      $region86: #{dehaze_block.1} parent=83 // pred_check_branch
        %2922 = sbr.rel (%p2920) target = $region88
      $region87: #{dehaze_block.1} parent=83 // pred_region
        _
      $region88: #{dehaze_block.1} parent=83 // pred_fallthru
        _
    $region84: #{dehaze_block.1} parent=5 // pred_fallthru
      _
    %p2923 = scmp.le.s32.totalorder 2, %s22
    // Predicated region
    $region89: #{dehaze_block.1} parent=5 // pred_check
      %p2924 = pneg %p2923
    $region90: #{dehaze_block.1} parent=5 // pred_check_branch
      %2926 = sbr.rel (%p2924) target = $region92
    $region91: #{dehaze_block.1} parent=5 // pred_region
      %s2927 = ssub.s32 %s22, 2
      // Predicated region
      $region93: #{dehaze_block.1} parent=91 // pred_check
        %p2928 = pneg %p392
      $region94: #{dehaze_block.1} parent=91 // pred_check_branch
        %2930 = sbr.rel (%p2928) target = $region96
      $region95: #{dehaze_block.1} parent=91 // pred_region
        %p2931 = scmp.lt.s32.totalorder %s28, 1
        %s2932 = scalar_select %p2931, %s28, 1
        %s2933 = smul.addr %s2932, 4
        %s2934 = smul.addr %s2933, 8
        %s2935 = scalar_lea.vmem %s16, %s2934
      $region96: #{dehaze_block.1} parent=91 // pred_fallthru
        _
    $region92: #{dehaze_block.1} parent=5 // pred_fallthru
      _
  $region6: #{dehaze_block.1} parent=0 // loop_footer
    %s26 = sadd.s32 1, %s22
  $region7: #{dehaze_block.1} parent=0 // loop_footer_branch
    %21 = sbr.rel target = $region3
  $region8: #{dehaze_block.1} parent=0 // loop_exit
    _

</llo_original>
